<compile_context>
chip_gen: v7x
topology: tpu7x:2x2x1
jax: 0.10.0
libtpu: 0.0.40
codegen_flags: <defaults>
</compile_context>

<pallas_src>
import jax
import jax.numpy as jnp
from jax.experimental import pallas as pl
from jax.experimental.pallas import tpu as pltpu

FILTER_SIZES = (1, 2, 3, 4, 5, 6)
NUM_FILTERS = 40
FEATURE_DIM = 40
MAX_FS = max(FILTER_SIZES)
N_FEATS = len(FILTER_SIZES) * NUM_FILTERS            # 240
NEG_BIG = -1e30                                      # finite "-inf" (relu-safe)


def _round_up(x, m):
    return (x + m - 1) // m * m


BLOCK_N = _round_up(N_FEATS, 128)                    # 256: lane-padded pooled width
OUT_PAD = 128                                        # lane-padded head output width
HALO = 16                                            # sublane-aligned halo >= MAX_FS-1


def _detector_kernel(emb_ref, halo_ref, mask_ref, w_pack_ref, b_pool_ref,
                     w_head_ref, b_head_ref, out_ref, acc_ref, win_ref):
    j = pl.program_id(1)                              # time-chunk index (innermost)
    tb, chunk_t, e = emb_ref.shape

    @pl.when(j == 0)
    def _():
        acc_ref[...] = jnp.full_like(acc_ref, NEG_BIG)

    # ---- im2col window build: win[b,t,k*E:(k+1)*E] = emb[b, chunk0+t+k, :] --
    full = jnp.concatenate([emb_ref[...], halo_ref[...]], axis=1)      # (tb, C+16, E)
    for k in range(MAX_FS):
        win_ref[:, :, k * e:(k + 1) * e] = full[:, k:k + chunk_t, :]

    # ---- one MXU matmul per chunk: K = 6E, N = 256 (lane aligned) ----------
    p = jnp.dot(win_ref[...].reshape(tb * chunk_t, MAX_FS * e), w_pack_ref[...],
                preferred_element_type=jnp.float32)                    # (tb*C, 256) f32
    p = p.reshape(tb, chunk_t, BLOCK_N)

    # ---- additive {0,-1e30} validity mask, running max over time chunks ----
    acc_ref[...] = jnp.maximum(acc_ref[...], jnp.max(p + mask_ref[...], axis=1))

    @pl.when(j == pl.num_programs(1) - 1)
    def _():
        # bias then relu:  max_t relu(c_t + b) == relu(max_t c_t + b).
        feats = jnp.maximum(acc_ref[...] + b_pool_ref[...], 0.0)       # (tb, 256) f32
        logits = jnp.dot(feats, w_head_ref[...],
                         preferred_element_type=jnp.float32) + b_head_ref[...]
        out_ref[...] = jax.nn.sigmoid(logits)                          # (tb, 128)


def _pack_conv_weights(params, embedding_dim, dtype):
    """im2col packing: rows [k*E:(k+1)*E], cols [j*40:(j+1)*40] hold row k of the
    filter with size fs=j+1 (zeros for k >= fs and for the 240->256 lane pad)."""
    e = embedding_dim
    rows = []
    for k in range(MAX_FS):
        cols = []
        for fs in FILTER_SIZES:
            if k < fs:
                cols.append(params[f"conv_w_{fs}"].reshape(fs, e, NUM_FILTERS)[k])
            else:
                cols.append(jnp.zeros((e, NUM_FILTERS), jnp.float32))
        cols.append(jnp.zeros((e, BLOCK_N - N_FEATS), jnp.float32))
        rows.append(jnp.concatenate(cols, axis=1))                     # (E, 256)
    return jnp.concatenate(rows, axis=0).astype(dtype)                 # (6E, 256)


def _vmem_capacity_bytes():
    try:
        return int(pltpu.get_tpu_info().vmem_capacity_bytes)
    except Exception:                                                  # pragma: no cover
        return 64 * 1024 * 1024                                        # v7x-safe default


def _per_step_vmem_bytes(tile_b, chunk_t, e):
    """Conservative per-grid-step VMEM estimate (double-buffered inputs/outputs)."""
    emb = 2 * tile_b * chunk_t * e * 2
    halo = 2 * tile_b * HALO * e * 2
    full = tile_b * (chunk_t + HALO) * e * 2
    mask = 2 * chunk_t * BLOCK_N * 4
    windows = tile_b * chunk_t * MAX_FS * e * 2
    p = 2 * tile_b * chunk_t * BLOCK_N * 4            # matmul result + masked temp
    acc = tile_b * BLOCK_N * 4
    out = 2 * tile_b * OUT_PAD * 4
    weights = (MAX_FS * e * BLOCK_N * 2 + BLOCK_N * 4
               + BLOCK_N * OUT_PAD * 4 + OUT_PAD * 4)
    return emb + halo + full + mask + windows + p + acc + out + 2 * weights


@jax.jit
def fake_news_detector_forward(tokens, params):
    """tokens: int32 (B, L); returns sigmoid probabilities (B, 1) float32."""
    emb_tab = params["embedding"]
    b, l = tokens.shape
    e = emb_tab.shape[1]
    if l < MAX_FS:
        raise ValueError(f"sequence length {l} must be >= max filter size {MAX_FS}")

    # Embedding lookup is glue (gather) and stays in XLA.
    # TODO(synk): gather embedding rows in-kernel (scalar-prefetched token ids +
    # manual DMA from an HBM-resident table) to avoid the HBM round trip of emb.
    emb = emb_tab.astype(jnp.bfloat16)[tokens]                         # (B, L, E) bf16

    # ---- tile selection with a generation-aware VMEM budget -----------------
    vmem_cap = _vmem_capacity_bytes()
    budget = (vmem_cap * 3) // 8                   # ~24 MiB on v7x, ~48 MiB on v5e/v6e
    b_pad8 = _round_up(b, 8)
    tile_b = min(128, b_pad8)
    if b_pad8 // tile_b < 2 and b_pad8 >= 16:      # >=2 batch steps for v7x megacore
        tile_b = max(8, (b_pad8 // 2) // 8 * 8)
    chunk_t = min(_round_up(l, 16), 512)           # multiples of 16: bf16 (16,128) tiles
    while chunk_t > 16 and _per_step_vmem_bytes(tile_b, chunk_t, e) > budget:
        chunk_t -= 16
    while tile_b > 8 and _per_step_vmem_bytes(tile_b, chunk_t, e) > budget:
        tile_b -= 8

    num_chunks = pl.cdiv(l, chunk_t)
    t_total = num_chunks * chunk_t
    b_pad = _round_up(b, tile_b)
    emb = jnp.pad(emb, ((0, b_pad - b), (0, t_total + HALO - l), (0, 0)))

    # Additive time-validity mask: 0 where position t is valid for the lane's
    # filter size (t <= L - fs) and the lane is a real feature, else -1e30.
    t_idx = jnp.arange(t_total, dtype=jnp.int32)[:, None]
    lane = jnp.arange(BLOCK_N, dtype=jnp.int32)[None, :]
    fs_of_lane = jnp.minimum(lane // NUM_FILTERS, len(FILTER_SIZES) - 1) + 1
    valid = (t_idx <= (l - fs_of_lane)) & (lane < N_FEATS)
    mask = jnp.where(valid, 0.0, NEG_BIG).astype(jnp.float32)          # (T, 256)

    # Packed parameters (tiny; traced once per call shape).
    w_pack = _pack_conv_weights(params, e, jnp.bfloat16)               # (6E, 256) bf16
    b_pool = jnp.concatenate([params[f"conv_b_{f}"] for f in FILTER_SIZES], axis=1)
    b_pool = jnp.pad(b_pool, ((0, 0), (0, BLOCK_N - N_FEATS)))         # (1, 256) f32
    # The two head linears have no nonlinearity in between -> fold them.
    w_head = params["enc_w"] @ params["fc_w"]                          # (240, 1)
    b_head = params["enc_b"] @ params["fc_w"] + params["fc_b"]         # (1, 1)
    w_head = jnp.pad(w_head, ((0, BLOCK_N - N_FEATS), (0, OUT_PAD - 1)))  # (256, 128)
    b_head = jnp.pad(b_head, ((0, 0), (0, OUT_PAD - 1)))               # (1, 128)

    halo_blk = chunk_t // HALO
    resident = lambda shape: pl.BlockSpec(shape, lambda i, j: (0,) * len(shape))
    out = pl.pallas_call(
        _detector_kernel,
        out_shape=jax.ShapeDtypeStruct((b_pad, OUT_PAD), jnp.float32),
        grid=(b_pad // tile_b, num_chunks),
        in_specs=[
            pl.BlockSpec((tile_b, chunk_t, e), lambda i, j: (i, j, 0)),        # emb chunk
            pl.BlockSpec((tile_b, HALO, e),                                    # 16-row halo
                         lambda i, j: (i, (j + 1) * halo_blk, 0)),
            pl.BlockSpec((chunk_t, BLOCK_N), lambda i, j: (j, 0)),             # time mask
            resident((MAX_FS * e, BLOCK_N)),                                   # w_pack
            resident((1, BLOCK_N)),                                            # b_pool
            resident((BLOCK_N, OUT_PAD)),                                      # w_head
            resident((1, OUT_PAD)),                                            # b_head
        ],
        out_specs=pl.BlockSpec((tile_b, OUT_PAD), lambda i, j: (i, 0)),
        scratch_shapes=[
            pltpu.VMEM((tile_b, BLOCK_N), jnp.float32),                        # running max
            pltpu.VMEM((tile_b, chunk_t, MAX_FS * e), jnp.bfloat16),           # im2col windows
        ],
        compiler_params=pltpu.CompilerParams(
            dimension_semantics=("parallel", "arbitrary"),
            vmem_limit_bytes=int(vmem_cap // 2)),
    )(emb, emb, mask, w_pack, b_pool, w_head, b_head)
    return out[:b, :1]


def _reference_forward(tokens, params):
    """Pure-JAX f32 reference matching the PyTorch module."""
    emb = params["embedding"][tokens]                                  # (B, L, E)
    b, l, e = emb.shape
    pooled = []
    for fs in FILTER_SIZES:
        w = params[f"conv_w_{fs}"]                                     # (fs*E, F)
        bias = params[f"conv_b_{fs}"]                                  # (1, F)
        windows = jnp.stack(
            [emb[:, t:t + fs, :].reshape(b, fs * e) for t in range(l - fs + 1)],
            axis=1)                                                    # (B, n_pos, fs*E)
        c = windows @ w + bias
        pooled.append(jnp.max(jax.nn.relu(c), axis=1))
    feats = jnp.concatenate(pooled, axis=-1)                           # (B, 240)
    h = feats @ params["enc_w"] + params["enc_b"]
    logits = h @ params["fc_w"] + params["fc_b"]
    return jax.nn.sigmoid(logits)


def init_params(key, vocab_size, embedding_dim):
    """Deterministic synthetic parameters matching FakeNewsDetector's shapes."""
    keys = jax.random.split(key, 4 + 2 * len(FILTER_SIZES))
    params = {}
    params["embedding"] = 0.1 * jax.random.normal(
        keys[0], (vocab_size, embedding_dim), jnp.float32)
    # Conv2d(1, 40, (fs, E)) weights: torch (F, 1, fs, E) -> (fs*E, F).
    for i, fs in enumerate(FILTER_SIZES):
        w = 0.1 * jax.random.normal(
            keys[1 + i], (NUM_FILTERS, fs, embedding_dim), jnp.float32)
        params[f"conv_w_{fs}"] = w.reshape(NUM_FILTERS, fs * embedding_dim).T
        params[f"conv_b_{fs}"] = 0.01 * jax.random.normal(
            keys[1 + len(FILTER_SIZES) + i], (1, NUM_FILTERS), jnp.float32)
    # Encoder projection Linear(240, 40): torch weight (40, 240) -> (240, 40).
    params["enc_w"] = 0.1 * jax.random.normal(
        keys[-3], (len(FILTER_SIZES) * NUM_FILTERS, FEATURE_DIM), jnp.float32)
    params["enc_b"] = jnp.zeros((1, FEATURE_DIM), jnp.float32)
    # Head Linear(40, 1): torch weight (1, 40) -> (40, 1).
    params["fc_w"] = 0.1 * jax.random.normal(keys[-2], (FEATURE_DIM, 1), jnp.float32)
    params["fc_b"] = jnp.zeros((1, 1), jnp.float32)
    return params


if __name__ == "__main__":
    B, L, E, VOCAB = 2, 8, 32, 50    # seq len L=8 >= max filter size 6

    key = jax.random.PRNGKey(0)
    k_tok, k_param = jax.random.split(key)
    params = init_params(k_param, VOCAB, E)
    tokens = jax.random.randint(k_tok, (B, L), 0, VOCAB, dtype=jnp.int32)

    out = fake_news_detector_forward(tokens, params)
    out = jax.block_until_ready(out)

    assert out.shape == (B, 1) and out.dtype == jnp.float32
    assert bool(jnp.all((out >= 0.0) & (out <= 1.0)))

    ref = _reference_forward(tokens, params)
    assert bool(jnp.all(jnp.abs(out - ref) < 2e-2)), (out, ref)
    print("KERNEL_OK")
</pallas_src>

<mosaic_0001>
module attributes {stable_mosaic.version = 11 : i64} {
  func.func @_detector_kernel(%arg0: i32, %arg1: i32, %arg2: memref<8x16x32xbf16, #tpu.memory_space<vmem>>, %arg3: memref<8x16x32xbf16, #tpu.memory_space<vmem>>, %arg4: memref<16x256xf32, #tpu.memory_space<vmem>>, %arg5: memref<192x256xbf16, #tpu.memory_space<vmem>>, %arg6: memref<1x256xf32, #tpu.memory_space<vmem>>, %arg7: memref<256x128xf32, #tpu.memory_space<vmem>>, %arg8: memref<1x128xf32, #tpu.memory_space<vmem>>, %arg9: memref<8x128xf32, #tpu.memory_space<vmem>>, %arg10: memref<8x256xf32, #tpu.memory_space<vmem>>, %arg11: memref<8x16x192xbf16, #tpu.memory_space<vmem>>) attributes {dimension_semantics = [#tpu.dimension_semantics<parallel>, #tpu.dimension_semantics<arbitrary>], iteration_bounds = array<i64: 1, 1>, scalar_prefetch = 0 : i64, scratch_operands = 2 : i64, tpu.core_type = #tpu.core_type<tc>, window_params = [{transform_indices = @transform_0, window_bounds = array<i64: 8, 16, 32>}, {transform_indices = @transform_1, window_bounds = array<i64: 8, 16, 32>}, {transform_indices = @transform_2, window_bounds = array<i64: 16, 256>}, {pipeline_mode = #tpu.pipeline_mode<synchronous>, transform_indices = @transform_3, window_bounds = array<i64: 192, 256>}, {pipeline_mode = #tpu.pipeline_mode<synchronous>, transform_indices = @transform_4, window_bounds = array<i64: 1, 256>}, {pipeline_mode = #tpu.pipeline_mode<synchronous>, transform_indices = @transform_5, window_bounds = array<i64: 256, 128>}, {pipeline_mode = #tpu.pipeline_mode<synchronous>, transform_indices = @transform_6, window_bounds = array<i64: 1, 128>}, {transform_indices = @transform_7, window_bounds = array<i64: 8, 128>}]} {
    %c0_i32 = arith.constant 0 : i32
    %0 = arith.cmpi eq, %arg1, %c0_i32 : i32
    %1 = arith.extui %0 : i1 to i32
    %c0_i32_0 = arith.constant 0 : i32
    %2 = arith.cmpi ne, %1, %c0_i32_0 : i32
    scf.if %2 {
      %cst_33 = arith.constant -1.000000e+30 : f32
      %34 = vector.broadcast %cst_33 : f32 to vector<8x256xf32>
      %c0_34 = arith.constant 0 : index
      %c0_35 = arith.constant 0 : index
      %35 = vector.load %arg10[%c0_34, %c0_35] : memref<8x256xf32, #tpu.memory_space<vmem>>, vector<8x256xf32>
      tpu.vector_store %arg10[%c0_34, %c0_35], %34 {strides = array<i32>} : memref<8x256xf32, #tpu.memory_space<vmem>>, vector<8x256xf32>,
    } else {
    }
    %c0 = arith.constant 0 : index
    %c0_1 = arith.constant 0 : index
    %c0_2 = arith.constant 0 : index
    %3 = vector.load %arg2[%c0, %c0_1, %c0_2] : memref<8x16x32xbf16, #tpu.memory_space<vmem>>, vector<8x16x32xbf16>
    %c0_3 = arith.constant 0 : index
    %c0_4 = arith.constant 0 : index
    %c0_5 = arith.constant 0 : index
    %4 = vector.load %arg3[%c0_3, %c0_4, %c0_5] : memref<8x16x32xbf16, #tpu.memory_space<vmem>>, vector<8x16x32xbf16>
    %5 = tpu.concatenate %3, %4 in 1 : vector<8x16x32xbf16>, vector<8x16x32xbf16> -> vector<8x32x32xbf16>
    %6 = vector.extract_strided_slice %5 {offsets = [0, 0, 0], sizes = [8, 16, 32], strides = [1, 1, 1]} : vector<8x32x32xbf16> to vector<8x16x32xbf16>
    %c0_6 = arith.constant 0 : index
    %c0_7 = arith.constant 0 : index
    %c0_8 = arith.constant 0 : index
    %7 = vector.load %arg11[%c0_6, %c0_7, %c0_8] : memref<8x16x192xbf16, #tpu.memory_space<vmem>>, vector<8x16x32xbf16>
    tpu.vector_store %arg11[%c0_6, %c0_7, %c0_8], %6 {strides = array<i32>} : memref<8x16x192xbf16, #tpu.memory_space<vmem>>, vector<8x16x32xbf16>,
    %8 = vector.extract_strided_slice %5 {offsets = [0, 1, 0], sizes = [8, 16, 32], strides = [1, 1, 1]} : vector<8x32x32xbf16> to vector<8x16x32xbf16>
    %c0_9 = arith.constant 0 : index
    %c0_10 = arith.constant 0 : index
    %c32 = arith.constant 32 : index
    %9 = vector.load %arg11[%c0_9, %c0_10, %c32] : memref<8x16x192xbf16, #tpu.memory_space<vmem>>, vector<8x16x32xbf16>
    tpu.vector_store %arg11[%c0_9, %c0_10, %c32], %8 {strides = array<i32>} : memref<8x16x192xbf16, #tpu.memory_space<vmem>>, vector<8x16x32xbf16>,
    %10 = vector.extract_strided_slice %5 {offsets = [0, 2, 0], sizes = [8, 16, 32], strides = [1, 1, 1]} : vector<8x32x32xbf16> to vector<8x16x32xbf16>
    %c0_11 = arith.constant 0 : index
    %c0_12 = arith.constant 0 : index
    %c64 = arith.constant 64 : index
    %11 = vector.load %arg11[%c0_11, %c0_12, %c64] : memref<8x16x192xbf16, #tpu.memory_space<vmem>>, vector<8x16x32xbf16>
    tpu.vector_store %arg11[%c0_11, %c0_12, %c64], %10 {strides = array<i32>} : memref<8x16x192xbf16, #tpu.memory_space<vmem>>, vector<8x16x32xbf16>,
    %12 = vector.extract_strided_slice %5 {offsets = [0, 3, 0], sizes = [8, 16, 32], strides = [1, 1, 1]} : vector<8x32x32xbf16> to vector<8x16x32xbf16>
    %c0_13 = arith.constant 0 : index
    %c0_14 = arith.constant 0 : index
    %c96 = arith.constant 96 : index
    %13 = vector.load %arg11[%c0_13, %c0_14, %c96] : memref<8x16x192xbf16, #tpu.memory_space<vmem>>, vector<8x16x32xbf16>
    tpu.vector_store %arg11[%c0_13, %c0_14, %c96], %12 {strides = array<i32>} : memref<8x16x192xbf16, #tpu.memory_space<vmem>>, vector<8x16x32xbf16>,
    %14 = vector.extract_strided_slice %5 {offsets = [0, 4, 0], sizes = [8, 16, 32], strides = [1, 1, 1]} : vector<8x32x32xbf16> to vector<8x16x32xbf16>
    %c0_15 = arith.constant 0 : index
    %c0_16 = arith.constant 0 : index
    %c128 = arith.constant 128 : index
    %15 = vector.load %arg11[%c0_15, %c0_16, %c128] : memref<8x16x192xbf16, #tpu.memory_space<vmem>>, vector<8x16x32xbf16>
    tpu.vector_store %arg11[%c0_15, %c0_16, %c128], %14 {strides = array<i32>} : memref<8x16x192xbf16, #tpu.memory_space<vmem>>, vector<8x16x32xbf16>,
    %16 = vector.extract_strided_slice %5 {offsets = [0, 5, 0], sizes = [8, 16, 32], strides = [1, 1, 1]} : vector<8x32x32xbf16> to vector<8x16x32xbf16>
    %c0_17 = arith.constant 0 : index
    %c0_18 = arith.constant 0 : index
    %c160 = arith.constant 160 : index
    %17 = vector.load %arg11[%c0_17, %c0_18, %c160] : memref<8x16x192xbf16, #tpu.memory_space<vmem>>, vector<8x16x32xbf16>
    tpu.vector_store %arg11[%c0_17, %c0_18, %c160], %16 {strides = array<i32>} : memref<8x16x192xbf16, #tpu.memory_space<vmem>>, vector<8x16x32xbf16>,
    %c0_19 = arith.constant 0 : index
    %c0_20 = arith.constant 0 : index
    %c0_21 = arith.constant 0 : index
    %18 = vector.load %arg11[%c0_19, %c0_20, %c0_21] : memref<8x16x192xbf16, #tpu.memory_space<vmem>>, vector<8x16x192xbf16>
    %19 = vector.shape_cast %18 : vector<8x16x192xbf16> to vector<128x192xbf16>
    %c0_22 = arith.constant 0 : index
    %c0_23 = arith.constant 0 : index
    %20 = vector.load %arg5[%c0_22, %c0_23] : memref<192x256xbf16, #tpu.memory_space<vmem>>, vector<192x256xbf16>
    %cst = arith.constant dense<0.000000e+00> : vector<128x256xf32>
    %21 = tpu.matmul %19, %20, %cst {dimension_numbers = #tpu.dot_dimension_numbers<[1], [0], [0], [1], [0, 0, 1, 1], [], []>} : vector<128x192xbf16>, vector<192x256xbf16>, vector<128x256xf32> -> vector<128x256xf32>
    %22 = vector.shape_cast %21 : vector<128x256xf32> to vector<8x16x256xf32>
    %c0_24 = arith.constant 0 : index
    %c0_25 = arith.constant 0 : index
    %23 = vector.load %arg10[%c0_24, %c0_25] : memref<8x256xf32, #tpu.memory_space<vmem>>, vector<8x256xf32>
    %c0_26 = arith.constant 0 : index
    %c0_27 = arith.constant 0 : index
    %24 = vector.load %arg4[%c0_26, %c0_27] : memref<16x256xf32, #tpu.memory_space<vmem>>, vector<16x256xf32>
    %25 = vector.shape_cast %24 : vector<16x256xf32> to vector<1x16x256xf32>
    %26 = vector.broadcast %25 : vector<1x16x256xf32> to vector<8x16x256xf32>
    %27 = arith.addf %22, %26 : vector<8x16x256xf32>
    %cst_28 = arith.constant dense<0xFF800000> : vector<8x256xf32>
    %28 = vector.multi_reduction <maximumf>, %27, %cst_28 [1] : vector<8x16x256xf32> to vector<8x256xf32>
    %29 = arith.maximumf %23, %28 : vector<8x256xf32>
    %c0_29 = arith.constant 0 : index
    %c0_30 = arith.constant 0 : index
    %30 = vector.load %arg10[%c0_29, %c0_30] : memref<8x256xf32, #tpu.memory_space<vmem>>, vector<8x256xf32>
    tpu.vector_store %arg10[%c0_29, %c0_30], %29 {strides = array<i32>} : memref<8x256xf32, #tpu.memory_space<vmem>>, vector<8x256xf32>,
    %c0_i32_31 = arith.constant 0 : i32
    %31 = arith.cmpi eq, %arg1, %c0_i32_31 : i32
    %32 = arith.extui %31 : i1 to i32
    %c0_i32_32 = arith.constant 0 : i32
    %33 = arith.cmpi ne, %32, %c0_i32_32 : i32
    scf.if %33 {
      %c0_33 = arith.constant 0 : index
      %c0_34 = arith.constant 0 : index
      %34 = vector.load %arg10[%c0_33, %c0_34] : memref<8x256xf32, #tpu.memory_space<vmem>>, vector<8x256xf32>
      %c0_35 = arith.constant 0 : index
      %c0_36 = arith.constant 0 : index
      %35 = vector.load %arg6[%c0_35, %c0_36] : memref<1x256xf32, #tpu.memory_space<vmem>>, vector<1x256xf32>
      %36 = vector.broadcast %35 : vector<1x256xf32> to vector<8x256xf32>
      %37 = arith.addf %34, %36 : vector<8x256xf32>
      %cst_37 = arith.constant 0.000000e+00 : f32
      %38 = vector.broadcast %cst_37 : f32 to vector<8x256xf32>
      %39 = arith.maximumf %37, %38 : vector<8x256xf32>
      %c0_38 = arith.constant 0 : index
      %c0_39 = arith.constant 0 : index
      %40 = vector.load %arg7[%c0_38, %c0_39] : memref<256x128xf32, #tpu.memory_space<vmem>>, vector<256x128xf32>
      %cst_40 = arith.constant dense<0.000000e+00> : vector<8x128xf32>
      %41 = tpu.matmul %39, %40, %cst_40 {dimension_numbers = #tpu.dot_dimension_numbers<[1], [0], [0], [1], [0, 0, 1, 1], [], []>} : vector<8x256xf32>, vector<256x128xf32>, vector<8x128xf32> -> vector<8x128xf32>
      %c0_41 = arith.constant 0 : index
      %c0_42 = arith.constant 0 : index
      %42 = vector.load %arg8[%c0_41, %c0_42] : memref<1x128xf32, #tpu.memory_space<vmem>>, vector<1x128xf32>
      %43 = vector.broadcast %42 : vector<1x128xf32> to vector<8x128xf32>
      %44 = arith.addf %41, %43 : vector<8x128xf32>
      %45 = arith.negf %44 : vector<8x128xf32>
      %46 = math.exp %45 : vector<8x128xf32>
      %cst_43 = arith.constant 1.000000e+00 : f32
      %47 = vector.broadcast %cst_43 : f32 to vector<8x128xf32>
      %48 = arith.addf %47, %46 : vector<8x128xf32>
      %49 = arith.divf %47, %48 : vector<8x128xf32>
      %c0_44 = arith.constant 0 : index
      %c0_45 = arith.constant 0 : index
      %50 = vector.load %arg9[%c0_44, %c0_45] : memref<8x128xf32, #tpu.memory_space<vmem>>, vector<8x128xf32>
      tpu.vector_store %arg9[%c0_44, %c0_45], %49 {strides = array<i32>} : memref<8x128xf32, #tpu.memory_space<vmem>>, vector<8x128xf32>,
    } else {
    }
    return
  }
  func.func @transform_0(%arg0: i32, %arg1: i32) -> (i32, i32, i32) {
    %c0_i32 = arith.constant 0 : i32
    %c0_i32_0 = arith.constant 0 : i32
    return %arg0, %arg1, %c0_i32 : i32, i32, i32
  }
  func.func @transform_1(%arg0: i32, %arg1: i32) -> (i32, i32, i32) {
    %c1_i32 = arith.constant 1 : i32
    %0 = arith.addi %arg1, %c1_i32 : i32
    %c1_i32_0 = arith.constant 1 : i32
    %1 = arith.muli %0, %c1_i32_0 : i32
    %c0_i32 = arith.constant 0 : i32
    %c0_i32_1 = arith.constant 0 : i32
    return %arg0, %1, %c0_i32 : i32, i32, i32
  }
  func.func @transform_2(%arg0: i32, %arg1: i32) -> (i32, i32) {
    %c0_i32 = arith.constant 0 : i32
    %c0_i32_0 = arith.constant 0 : i32
    return %arg1, %c0_i32 : i32, i32
  }
  func.func @transform_3(%arg0: i32, %arg1: i32) -> (i32, i32) {
    %c0_i32 = arith.constant 0 : i32
    %c0_i32_0 = arith.constant 0 : i32
    %c0_i32_1 = arith.constant 0 : i32
    return %c0_i32, %c0_i32_0 : i32, i32
  }
  func.func @transform_4(%arg0: i32, %arg1: i32) -> (i32, i32) {
    %c0_i32 = arith.constant 0 : i32
    %c0_i32_0 = arith.constant 0 : i32
    %c0_i32_1 = arith.constant 0 : i32
    return %c0_i32, %c0_i32_0 : i32, i32
  }
  func.func @transform_5(%arg0: i32, %arg1: i32) -> (i32, i32) {
    %c0_i32 = arith.constant 0 : i32
    %c0_i32_0 = arith.constant 0 : i32
    %c0_i32_1 = arith.constant 0 : i32
    return %c0_i32, %c0_i32_0 : i32, i32
  }
  func.func @transform_6(%arg0: i32, %arg1: i32) -> (i32, i32) {
    %c0_i32 = arith.constant 0 : i32
    %c0_i32_0 = arith.constant 0 : i32
    %c0_i32_1 = arith.constant 0 : i32
    return %c0_i32, %c0_i32_0 : i32, i32
  }
  func.func @transform_7(%arg0: i32, %arg1: i32) -> (i32, i32) {
    %c0_i32 = arith.constant 0 : i32
    %c0_i32_0 = arith.constant 0 : i32
    return %arg0, %c0_i32 : i32, i32
  }
}

</mosaic_0001>

<llo_original>
// kernel: fake_news_detector_forward.1
$region0: #{fake_news_detector_forward.1}
  #allocation0 [shape = 'u32[]', space=smem, size = 0x4, offset = 0x4, fixed_abs, tag = 'smem constant byte address 0x4 - core index']
  #allocation1 [shape = 'u32[144,128]{1,0:T(1,128)}', space=vmem, size = 0x12000, scoped, tag = 'internal scratch']
  #allocation2 [shape = 'f32[8,256]{1,0:T(8,128)}', space=vmem, size = 0x2000, scoped, tag = 'scratch operand']
  #allocation3 [shape = 'bf16[8,16,192]{2,1,0:T(16,128)(2,1)}', space=vmem, size = 0x10000, scoped, tag = 'scratch operand']
  %s0 = inlined_call_operand.vmem [shape: bf16[8,32,32], index: 0, kind: input, shape index: {}, may-alias: {0,1}]
  %s1 = inlined_call_operand.vmem [shape: bf16[8,32,32], index: 1, kind: input, shape index: {}, may-alias: {0,1}]
  %s2 = inlined_call_operand.vmem [shape: f32[16,256], index: 2, kind: input, shape index: {}]
  %s3 = inlined_call_operand.vmem [shape: bf16[192,256], index: 3, kind: input, shape index: {}]
  %s4 = inlined_call_operand.vmem [shape: f32[1,256], index: 4, kind: input, shape index: {}]
  %s5 = inlined_call_operand.vmem [shape: f32[256,128], index: 5, kind: input, shape index: {}]
  %s6 = inlined_call_operand.vmem [shape: f32[1,128], index: 6, kind: input, shape index: {}]
  %s7 = inlined_call_operand.vmem [shape: f32[8,128], index: 7, kind: output, shape index: {}]
  %s8 = sld [smem:[#allocation0]]
  $region128: #{fake_news_detector_forward.1} parent=0
    _
  %s10 = ssub.s32 1, %s8
  %s11 = scalar_select 0, %s10, %s8
  $region1: #{fake_news_detector_forward.1} parent=0
    #allocation4 [shape = 'u8[32768]{0}', space=vmem, size = 0x8000, scoped, tag = 'input window, operand 0, single buffered']
    #allocation5 [shape = 'u8[32768]{0}', space=vmem, size = 0x8000, scoped, tag = 'input window, operand 1, single buffered']
    // Predicated region
    $region2: #{fake_news_detector_forward.1} parent=1 // pred_check
      _
    $region3: #{fake_news_detector_forward.1} parent=1 // pred_check_branch
      %13 = sbr.rel (0) target = $region5
    $region4: #{fake_news_detector_forward.1} parent=1 // pred_region
      // Predicated region
      $region6: #{fake_news_detector_forward.1} parent=4 // pred_check
        _
      $region7: #{fake_news_detector_forward.1} parent=4 // pred_check_branch
        %15 = sbr.rel (0) target = $region9
      $region8: #{fake_news_detector_forward.1} parent=4 // pred_region
        // Predicated region
        $region10: #{fake_news_detector_forward.1} parent=8 // pred_check
          _
        $region11: #{fake_news_detector_forward.1} parent=8 // pred_check_branch
          %17 = sbr.rel target = $region13
        $region12: #{fake_news_detector_forward.1} parent=8 // pred_region
          // Predicated region
          $region25: #{fake_news_detector_forward.1} parent=12 // pred_check
            _
          $region26: #{fake_news_detector_forward.1} parent=12 // pred_check_branch
            %62 = sbr.rel (0) target = $region28
          $region27: #{fake_news_detector_forward.1} parent=12 // pred_region
            loop: start=0, step=1, limit=1
            $region29: #{fake_news_detector_forward.1} parent=27 // loop_pre_header
              _
            $region30: #{fake_news_detector_forward.1} parent=27 // loop_header
              %s64 = sphi 0, %s68
              %p65 = scmp.ge.s32.totalorder %s64, 1
              %s69 = sphi %s0, %s0
              %s70 = sphi [#allocation4], [#allocation4]
            $region31: #{fake_news_detector_forward.1} parent=27 // loop_header_branch
              %67 = sbr.rel (%p65) target = $region35
            $region32: #{fake_news_detector_forward.1} parent=27 // loop_body
              _
            $region33: #{fake_news_detector_forward.1} parent=27 // loop_footer
              %s68 = sadd.s32 1, %s64
            $region34: #{fake_news_detector_forward.1} parent=27 // loop_footer_branch
              %63 = sbr.rel target = $region30
            $region35: #{fake_news_detector_forward.1} parent=27 // loop_exit
              _
            loop: start=0, step=1, limit=1
            $region36: #{fake_news_detector_forward.1} parent=27 // loop_pre_header
              _
            $region37: #{fake_news_detector_forward.1} parent=27 // loop_header
              %s73 = sphi 0, %s77
              %p74 = scmp.ge.s32.totalorder %s73, 1
              %s78 = sphi %s0, %s0
              %s79 = sphi [#allocation4], [#allocation4]
            $region38: #{fake_news_detector_forward.1} parent=27 // loop_header_branch
              %76 = sbr.rel (%p74) target = $region42
            $region39: #{fake_news_detector_forward.1} parent=27 // loop_body
              %v80 = vld [vmem:[%s78] sm:$0xf]
              %81 = vst [vmem:[%s79] sm:$0xf] %v80
              %v82 = vld [vmem:[%s78 + $0x4] sm:$0xf]
              %83 = vst [vmem:[%s79 + $0x4] sm:$0xf] %v82
              %v84 = vld [vmem:[%s78 + $0x10] sm:$0xf]
              %85 = vst [vmem:[%s79 + $0x8] sm:$0xf] %v84
              %v86 = vld [vmem:[%s78 + $0x14] sm:$0xf]
              %87 = vst [vmem:[%s79 + $0xc] sm:$0xf] %v86
              %v88 = vld [vmem:[%s78 + $0x20] sm:$0xf]
              %89 = vst [vmem:[%s79 + $0x10] sm:$0xf] %v88
              %v90 = vld [vmem:[%s78 + $0x24] sm:$0xf]
              %91 = vst [vmem:[%s79 + $0x14] sm:$0xf] %v90
              %v92 = vld [vmem:[%s78 + $0x30] sm:$0xf]
              %93 = vst [vmem:[%s79 + $0x18] sm:$0xf] %v92
              %v94 = vld [vmem:[%s78 + $0x34] sm:$0xf]
              %95 = vst [vmem:[%s79 + $0x1c] sm:$0xf] %v94
              %v96 = vld [vmem:[%s78 + $0x40] sm:$0xf]
              %97 = vst [vmem:[%s79 + $0x20] sm:$0xf] %v96
              %v98 = vld [vmem:[%s78 + $0x44] sm:$0xf]
              %99 = vst [vmem:[%s79 + $0x24] sm:$0xf] %v98
              %v100 = vld [vmem:[%s78 + $0x50] sm:$0xf]
              %101 = vst [vmem:[%s79 + $0x28] sm:$0xf] %v100
              %v102 = vld [vmem:[%s78 + $0x54] sm:$0xf]
              %103 = vst [vmem:[%s79 + $0x2c] sm:$0xf] %v102
              %v104 = vld [vmem:[%s78 + $0x60] sm:$0xf]
              %105 = vst [vmem:[%s79 + $0x30] sm:$0xf] %v104
              %v106 = vld [vmem:[%s78 + $0x64] sm:$0xf]
              %107 = vst [vmem:[%s79 + $0x34] sm:$0xf] %v106
              %v108 = vld [vmem:[%s78 + $0x70] sm:$0xf]
              %109 = vst [vmem:[%s79 + $0x38] sm:$0xf] %v108
              %v110 = vld [vmem:[%s78 + $0x74] sm:$0xf]
              %111 = vst [vmem:[%s79 + $0x3c] sm:$0xf] %v110
            $region40: #{fake_news_detector_forward.1} parent=27 // loop_footer
              %s77 = sadd.s32 1, %s73
            $region41: #{fake_news_detector_forward.1} parent=27 // loop_footer_branch
              %72 = sbr.rel target = $region37
            $region42: #{fake_news_detector_forward.1} parent=27 // loop_exit
              _
          $region28: #{fake_news_detector_forward.1} parent=12 // pred_fallthru
            _
        $region13: #{fake_news_detector_forward.1} parent=8 // pred_fallthru
          _
        // Predicated region
        $region14: #{fake_news_detector_forward.1} parent=8 // pred_check
          _
        $region15: #{fake_news_detector_forward.1} parent=8 // pred_check_branch
          %19 = sbr.rel (0) target = $region17
        $region16: #{fake_news_detector_forward.1} parent=8 // pred_region
          loop: start=0, step=1, limit=1
          $region18: #{fake_news_detector_forward.1} parent=16 // loop_pre_header
            _
          $region19: #{fake_news_detector_forward.1} parent=16 // loop_header
            %s22 = sphi 0, %s26
            %p23 = scmp.ge.s32.totalorder %s22, 1
            %s27 = sphi %s0, %s0
            %s28 = sphi [#allocation4], [#allocation4]
          $region20: #{fake_news_detector_forward.1} parent=16 // loop_header_branch
            %25 = sbr.rel (%p23) target = $region24
          $region21: #{fake_news_detector_forward.1} parent=16 // loop_body
            %v29 = vld [vmem:[%s27] sm:$0xf]
            %30 = vst [vmem:[%s28] sm:$0xf] %v29
            %v31 = vld [vmem:[%s27 + $0x4] sm:$0xf]
            %32 = vst [vmem:[%s28 + $0x4] sm:$0xf] %v31
            %v33 = vld [vmem:[%s27 + $0x10] sm:$0xf]
            %34 = vst [vmem:[%s28 + $0x8] sm:$0xf] %v33
            %v35 = vld [vmem:[%s27 + $0x14] sm:$0xf]
            %36 = vst [vmem:[%s28 + $0xc] sm:$0xf] %v35
            %v37 = vld [vmem:[%s27 + $0x20] sm:$0xf]
            %38 = vst [vmem:[%s28 + $0x10] sm:$0xf] %v37
            %v39 = vld [vmem:[%s27 + $0x24] sm:$0xf]
            %40 = vst [vmem:[%s28 + $0x14] sm:$0xf] %v39
            %v41 = vld [vmem:[%s27 + $0x30] sm:$0xf]
            %42 = vst [vmem:[%s28 + $0x18] sm:$0xf] %v41
            %v43 = vld [vmem:[%s27 + $0x34] sm:$0xf]
            %44 = vst [vmem:[%s28 + $0x1c] sm:$0xf] %v43
            %v45 = vld [vmem:[%s27 + $0x40] sm:$0xf]
            %46 = vst [vmem:[%s28 + $0x20] sm:$0xf] %v45
            %v47 = vld [vmem:[%s27 + $0x44] sm:$0xf]
            %48 = vst [vmem:[%s28 + $0x24] sm:$0xf] %v47
            %v49 = vld [vmem:[%s27 + $0x50] sm:$0xf]
            %50 = vst [vmem:[%s28 + $0x28] sm:$0xf] %v49
            %v51 = vld [vmem:[%s27 + $0x54] sm:$0xf]
            %52 = vst [vmem:[%s28 + $0x2c] sm:$0xf] %v51
            %v53 = vld [vmem:[%s27 + $0x60] sm:$0xf]
            %54 = vst [vmem:[%s28 + $0x30] sm:$0xf] %v53
            %v55 = vld [vmem:[%s27 + $0x64] sm:$0xf]
            %56 = vst [vmem:[%s28 + $0x34] sm:$0xf] %v55
            %v57 = vld [vmem:[%s27 + $0x70] sm:$0xf]
            %58 = vst [vmem:[%s28 + $0x38] sm:$0xf] %v57
            %v59 = vld [vmem:[%s27 + $0x74] sm:$0xf]
            %60 = vst [vmem:[%s28 + $0x3c] sm:$0xf] %v59
          $region22: #{fake_news_detector_forward.1} parent=16 // loop_footer
            %s26 = sadd.s32 1, %s22
          $region23: #{fake_news_detector_forward.1} parent=16 // loop_footer_branch
            %21 = sbr.rel target = $region19
          $region24: #{fake_news_detector_forward.1} parent=16 // loop_exit
            _
        $region17: #{fake_news_detector_forward.1} parent=8 // pred_fallthru
          _
      $region9: #{fake_news_detector_forward.1} parent=4 // pred_fallthru
        _
      %112 = vnop
    $region5: #{fake_news_detector_forward.1} parent=1 // pred_fallthru
      _
    // Predicated region
    $region43: #{fake_news_detector_forward.1} parent=1 // pred_check
      _
    $region44: #{fake_news_detector_forward.1} parent=1 // pred_check_branch
      %114 = sbr.rel (0) target = $region46
    $region45: #{fake_news_detector_forward.1} parent=1 // pred_region
      %s115 = sadd.s32 0, 1
      %s116 = smul.u32 2, %s115
      %s117 = smul.addr %s116, 4
      %s118 = scalar_lea.vmem %s1, %s117
      // Predicated region
      $region47: #{fake_news_detector_forward.1} parent=45 // pred_check
        _
      $region48: #{fake_news_detector_forward.1} parent=45 // pred_check_branch
        %120 = sbr.rel (0) target = $region50
      $region49: #{fake_news_detector_forward.1} parent=45 // pred_region
        // Predicated region
        $region51: #{fake_news_detector_forward.1} parent=49 // pred_check
          _
        $region52: #{fake_news_detector_forward.1} parent=49 // pred_check_branch
          %122 = sbr.rel target = $region54
        $region53: #{fake_news_detector_forward.1} parent=49 // pred_region
          // Predicated region
          $region66: #{fake_news_detector_forward.1} parent=53 // pred_check
            _
          $region67: #{fake_news_detector_forward.1} parent=53 // pred_check_branch
            %167 = sbr.rel (0) target = $region69
          $region68: #{fake_news_detector_forward.1} parent=53 // pred_region
            loop: start=0, step=1, limit=1
            $region70: #{fake_news_detector_forward.1} parent=68 // loop_pre_header
              _
            $region71: #{fake_news_detector_forward.1} parent=68 // loop_header
              %s169 = sphi 0, %s173
              %p170 = scmp.ge.s32.totalorder %s169, 1
              %s174 = sphi %s118, %s118
              %s175 = sphi [#allocation5], [#allocation5]
            $region72: #{fake_news_detector_forward.1} parent=68 // loop_header_branch
              %172 = sbr.rel (%p170) target = $region76
            $region73: #{fake_news_detector_forward.1} parent=68 // loop_body
              _
            $region74: #{fake_news_detector_forward.1} parent=68 // loop_footer
              %s173 = sadd.s32 1, %s169
            $region75: #{fake_news_detector_forward.1} parent=68 // loop_footer_branch
              %168 = sbr.rel target = $region71
            $region76: #{fake_news_detector_forward.1} parent=68 // loop_exit
              _
            loop: start=0, step=1, limit=1
            $region77: #{fake_news_detector_forward.1} parent=68 // loop_pre_header
              _
            $region78: #{fake_news_detector_forward.1} parent=68 // loop_header
              %s178 = sphi 0, %s182
              %p179 = scmp.ge.s32.totalorder %s178, 1
              %s183 = sphi %s118, %s118
              %s184 = sphi [#allocation5], [#allocation5]
            $region79: #{fake_news_detector_forward.1} parent=68 // loop_header_branch
              %181 = sbr.rel (%p179) target = $region83
            $region80: #{fake_news_detector_forward.1} parent=68 // loop_body
              %v185 = vld [vmem:[%s183] sm:$0xf]
              %186 = vst [vmem:[%s184] sm:$0xf] %v185
              %v187 = vld [vmem:[%s183 + $0x4] sm:$0xf]
              %188 = vst [vmem:[%s184 + $0x4] sm:$0xf] %v187
              %v189 = vld [vmem:[%s183 + $0x10] sm:$0xf]
              %190 = vst [vmem:[%s184 + $0x8] sm:$0xf] %v189
              %v191 = vld [vmem:[%s183 + $0x14] sm:$0xf]
              %192 = vst [vmem:[%s184 + $0xc] sm:$0xf] %v191
              %v193 = vld [vmem:[%s183 + $0x20] sm:$0xf]
              %194 = vst [vmem:[%s184 + $0x10] sm:$0xf] %v193
              %v195 = vld [vmem:[%s183 + $0x24] sm:$0xf]
              %196 = vst [vmem:[%s184 + $0x14] sm:$0xf] %v195
              %v197 = vld [vmem:[%s183 + $0x30] sm:$0xf]
              %198 = vst [vmem:[%s184 + $0x18] sm:$0xf] %v197
              %v199 = vld [vmem:[%s183 + $0x34] sm:$0xf]
              %200 = vst [vmem:[%s184 + $0x1c] sm:$0xf] %v199
              %v201 = vld [vmem:[%s183 + $0x40] sm:$0xf]
              %202 = vst [vmem:[%s184 + $0x20] sm:$0xf] %v201
              %v203 = vld [vmem:[%s183 + $0x44] sm:$0xf]
              %204 = vst [vmem:[%s184 + $0x24] sm:$0xf] %v203
              %v205 = vld [vmem:[%s183 + $0x50] sm:$0xf]
              %206 = vst [vmem:[%s184 + $0x28] sm:$0xf] %v205
              %v207 = vld [vmem:[%s183 + $0x54] sm:$0xf]
              %208 = vst [vmem:[%s184 + $0x2c] sm:$0xf] %v207
              %v209 = vld [vmem:[%s183 + $0x60] sm:$0xf]
              %210 = vst [vmem:[%s184 + $0x30] sm:$0xf] %v209
              %v211 = vld [vmem:[%s183 + $0x64] sm:$0xf]
              %212 = vst [vmem:[%s184 + $0x34] sm:$0xf] %v211
              %v213 = vld [vmem:[%s183 + $0x70] sm:$0xf]
              %214 = vst [vmem:[%s184 + $0x38] sm:$0xf] %v213
              %v215 = vld [vmem:[%s183 + $0x74] sm:$0xf]
              %216 = vst [vmem:[%s184 + $0x3c] sm:$0xf] %v215
            $region81: #{fake_news_detector_forward.1} parent=68 // loop_footer
              %s182 = sadd.s32 1, %s178
            $region82: #{fake_news_detector_forward.1} parent=68 // loop_footer_branch
              %177 = sbr.rel target = $region78
            $region83: #{fake_news_detector_forward.1} parent=68 // loop_exit
              _
          $region69: #{fake_news_detector_forward.1} parent=53 // pred_fallthru
            _
        $region54: #{fake_news_detector_forward.1} parent=49 // pred_fallthru
          _
        // Predicated region
        $region55: #{fake_news_detector_forward.1} parent=49 // pred_check
          _
        $region56: #{fake_news_detector_forward.1} parent=49 // pred_check_branch
          %124 = sbr.rel (0) target = $region58
        $region57: #{fake_news_detector_forward.1} parent=49 // pred_region
          loop: start=0, step=1, limit=1
          $region59: #{fake_news_detector_forward.1} parent=57 // loop_pre_header
            _
          $region60: #{fake_news_detector_forward.1} parent=57 // loop_header
            %s127 = sphi 0, %s131
            %p128 = scmp.ge.s32.totalorder %s127, 1
            %s132 = sphi %s118, %s118
            %s133 = sphi [#allocation5], [#allocation5]
          $region61: #{fake_news_detector_forward.1} parent=57 // loop_header_branch
            %130 = sbr.rel (%p128) target = $region65
          $region62: #{fake_news_detector_forward.1} parent=57 // loop_body
            %v134 = vld [vmem:[%s132] sm:$0xf]
            %135 = vst [vmem:[%s133] sm:$0xf] %v134
            %v136 = vld [vmem:[%s132 + $0x4] sm:$0xf]
            %137 = vst [vmem:[%s133 + $0x4] sm:$0xf] %v136
            %v138 = vld [vmem:[%s132 + $0x10] sm:$0xf]
            %139 = vst [vmem:[%s133 + $0x8] sm:$0xf] %v138
            %v140 = vld [vmem:[%s132 + $0x14] sm:$0xf]
            %141 = vst [vmem:[%s133 + $0xc] sm:$0xf] %v140
            %v142 = vld [vmem:[%s132 + $0x20] sm:$0xf]
            %143 = vst [vmem:[%s133 + $0x10] sm:$0xf] %v142
            %v144 = vld [vmem:[%s132 + $0x24] sm:$0xf]
            %145 = vst [vmem:[%s133 + $0x14] sm:$0xf] %v144
            %v146 = vld [vmem:[%s132 + $0x30] sm:$0xf]
            %147 = vst [vmem:[%s133 + $0x18] sm:$0xf] %v146
            %v148 = vld [vmem:[%s132 + $0x34] sm:$0xf]
            %149 = vst [vmem:[%s133 + $0x1c] sm:$0xf] %v148
            %v150 = vld [vmem:[%s132 + $0x40] sm:$0xf]
            %151 = vst [vmem:[%s133 + $0x20] sm:$0xf] %v150
            %v152 = vld [vmem:[%s132 + $0x44] sm:$0xf]
            %153 = vst [vmem:[%s133 + $0x24] sm:$0xf] %v152
            %v154 = vld [vmem:[%s132 + $0x50] sm:$0xf]
            %155 = vst [vmem:[%s133 + $0x28] sm:$0xf] %v154
            %v156 = vld [vmem:[%s132 + $0x54] sm:$0xf]
            %157 = vst [vmem:[%s133 + $0x2c] sm:$0xf] %v156
            %v158 = vld [vmem:[%s132 + $0x60] sm:$0xf]
            %159 = vst [vmem:[%s133 + $0x30] sm:$0xf] %v158
            %v160 = vld [vmem:[%s132 + $0x64] sm:$0xf]
            %161 = vst [vmem:[%s133 + $0x34] sm:$0xf] %v160
            %v162 = vld [vmem:[%s132 + $0x70] sm:$0xf]
            %163 = vst [vmem:[%s133 + $0x38] sm:$0xf] %v162
            %v164 = vld [vmem:[%s132 + $0x74] sm:$0xf]
            %165 = vst [vmem:[%s133 + $0x3c] sm:$0xf] %v164
          $region63: #{fake_news_detector_forward.1} parent=57 // loop_footer
            %s131 = sadd.s32 1, %s127
          $region64: #{fake_news_detector_forward.1} parent=57 // loop_footer_branch
            %126 = sbr.rel target = $region60
          $region65: #{fake_news_detector_forward.1} parent=57 // loop_exit
            _
        $region58: #{fake_news_detector_forward.1} parent=49 // pred_fallthru
          _
      $region50: #{fake_news_detector_forward.1} parent=45 // pred_fallthru
        _
      %217 = vnop
    $region46: #{fake_news_detector_forward.1} parent=1 // pred_fallthru
      _
    // Predicated region
    $region84: #{fake_news_detector_forward.1} parent=1 // pred_check
      _
    $region85: #{fake_news_detector_forward.1} parent=1 // pred_check_branch
      %219 = sbr.rel (0) target = $region87
    $region86: #{fake_news_detector_forward.1} parent=1 // pred_region
      _
    $region87: #{fake_news_detector_forward.1} parent=1 // pred_fallthru
      _
    // Predicated region
    $region88: #{fake_news_detector_forward.1} parent=1 // pred_check
      _
    $region89: #{fake_news_detector_forward.1} parent=1 // pred_check_branch
      %221 = sbr.rel (0) target = $region91
    $region90: #{fake_news_detector_forward.1} parent=1 // pred_region
      _
    $region91: #{fake_news_detector_forward.1} parent=1 // pred_fallthru
      _
    // Predicated region
    $region92: #{fake_news_detector_forward.1} parent=1 // pred_check
      _
    $region93: #{fake_news_detector_forward.1} parent=1 // pred_check_branch
      %223 = sbr.rel (0) target = $region95
    $region94: #{fake_news_detector_forward.1} parent=1 // pred_region
      _
    $region95: #{fake_news_detector_forward.1} parent=1 // pred_fallthru
      _
    // Predicated region
    $region96: #{fake_news_detector_forward.1} parent=1 // pred_check
      _
    $region97: #{fake_news_detector_forward.1} parent=1 // pred_check_branch
      %225 = sbr.rel (0) target = $region99
    $region98: #{fake_news_detector_forward.1} parent=1 // pred_region
      _
    $region99: #{fake_news_detector_forward.1} parent=1 // pred_fallthru
      _
    // Predicated region
    $region100: #{fake_news_detector_forward.1} parent=1 // pred_check
      _
    $region101: #{fake_news_detector_forward.1} parent=1 // pred_check_branch
      %227 = sbr.rel (0) target = $region103
    $region102: #{fake_news_detector_forward.1} parent=1 // pred_region
      _
    $region103: #{fake_news_detector_forward.1} parent=1 // pred_fallthru
      _
    // Predicated region
    $region104: #{fake_news_detector_forward.1} parent=1 // pred_check
      _
    $region105: #{fake_news_detector_forward.1} parent=1 // pred_check_branch
      %229 = sbr.rel (0) target = $region107
    $region106: #{fake_news_detector_forward.1} parent=1 // pred_region
      _
    $region107: #{fake_news_detector_forward.1} parent=1 // pred_fallthru
      _
    // Predicated region
    $region108: #{fake_news_detector_forward.1} parent=1 // pred_check
      _
    $region109: #{fake_news_detector_forward.1} parent=1 // pred_check_branch
      %231 = sbr.rel (0) target = $region111
    $region110: #{fake_news_detector_forward.1} parent=1 // pred_region
      _
    $region111: #{fake_news_detector_forward.1} parent=1 // pred_fallthru
      _
    %s232 = sadd.s32 0, 1
    %s233 = smul.u32 2, %s232
    %p235 = scmp.eq.s32.totalorder 0, 0
    // Predicated region
    $region112: #{fake_news_detector_forward.1} parent=1 // pred_check
      %p236 = pneg %p235
    $region113: #{fake_news_detector_forward.1} parent=1 // pred_check_branch
      %238 = sbr.rel (%p236) target = $region115
    $region114: #{fake_news_detector_forward.1} parent=1 // pred_region
      %239 = vst [vmem:[#allocation2] sm:$0xff] -1e+30
      %240 = vst [vmem:[#allocation2 + $0x8] sm:$0xff] -1e+30
    $region115: #{fake_news_detector_forward.1} parent=1 // pred_fallthru
      _
    %v241 = vld [vmem:[#allocation4] sm:$0xf]
    %v242 = vld [vmem:[#allocation4 + $0x4] sm:$0xf]
    %v243 = vld [vmem:[#allocation4 + $0x8] sm:$0xf]
    %v244 = vld [vmem:[#allocation4 + $0xc] sm:$0xf]
    %v245 = vld [vmem:[#allocation4 + $0x10] sm:$0xf]
    %v246 = vld [vmem:[#allocation4 + $0x14] sm:$0xf]
    %v247 = vld [vmem:[#allocation4 + $0x18] sm:$0xf]
    %v248 = vld [vmem:[#allocation4 + $0x1c] sm:$0xf]
    %v249 = vld [vmem:[#allocation4 + $0x20] sm:$0xf]
    %v250 = vld [vmem:[#allocation4 + $0x24] sm:$0xf]
    %v251 = vld [vmem:[#allocation4 + $0x28] sm:$0xf]
    %v252 = vld [vmem:[#allocation4 + $0x2c] sm:$0xf]
    %v253 = vld [vmem:[#allocation4 + $0x30] sm:$0xf]
    %v254 = vld [vmem:[#allocation4 + $0x34] sm:$0xf]
    %v255 = vld [vmem:[#allocation4 + $0x38] sm:$0xf]
    %v256 = vld [vmem:[#allocation4 + $0x3c] sm:$0xf]
    %v257 = vld [vmem:[#allocation5] sm:$0xf]
    %v258 = vld [vmem:[#allocation5 + $0x4] sm:$0xf]
    %v259 = vld [vmem:[#allocation5 + $0x8] sm:$0xf]
    %v260 = vld [vmem:[#allocation5 + $0xc] sm:$0xf]
    %v261 = vld [vmem:[#allocation5 + $0x10] sm:$0xf]
    %v262 = vld [vmem:[#allocation5 + $0x14] sm:$0xf]
    %v263 = vld [vmem:[#allocation5 + $0x18] sm:$0xf]
    %v264 = vld [vmem:[#allocation5 + $0x1c] sm:$0xf]
    %v265 = vld [vmem:[#allocation5 + $0x20] sm:$0xf]
    %v266 = vld [vmem:[#allocation5 + $0x24] sm:$0xf]
    %v267 = vld [vmem:[#allocation5 + $0x28] sm:$0xf]
    %v268 = vld [vmem:[#allocation5 + $0x2c] sm:$0xf]
    %v269 = vld [vmem:[#allocation5 + $0x30] sm:$0xf]
    %v270 = vld [vmem:[#allocation5 + $0x34] sm:$0xf]
    %v271 = vld [vmem:[#allocation5 + $0x38] sm:$0xf]
    %v272 = vld [vmem:[#allocation5 + $0x3c] sm:$0xf]
    %v289 = vunpack.c.l.b16 %v241
    %v290 = vunpack.c.l.b16 %v242
    %v291 = vunpack.c.l.b16 %v243
    %v292 = vunpack.c.l.b16 %v244
    %v293 = vunpack.c.l.b16 %v245
    %v294 = vunpack.c.l.b16 %v246
    %v295 = vunpack.c.l.b16 %v247
    %v296 = vunpack.c.l.b16 %v248
    %v297 = vunpack.c.l.b16 %v249
    %v298 = vunpack.c.l.b16 %v250
    %v299 = vunpack.c.l.b16 %v251
    %v300 = vunpack.c.l.b16 %v252
    %v301 = vunpack.c.l.b16 %v253
    %v302 = vunpack.c.l.b16 %v254
    %v303 = vunpack.c.l.b16 %v255
    %v304 = vunpack.c.l.b16 %v256
    %v305 = vpack.c.b16 %v290, %v289
    %v306 = vpack.c.b16 %v292, %v291
    %v307 = vpack.c.b16 %v294, %v293
    %v308 = vpack.c.b16 %v296, %v295
    %v309 = vpack.c.b16 %v298, %v297
    %v310 = vpack.c.b16 %v300, %v299
    %v311 = vpack.c.b16 %v302, %v301
    %v312 = vpack.c.b16 %v304, %v303
    %v337 = vunpack.c.l.b16 %v257
    %v338 = vunpack.c.l.b16 %v258
    %v339 = vunpack.c.l.b16 %v259
    %v340 = vunpack.c.l.b16 %v260
    %v341 = vunpack.c.l.b16 %v261
    %v342 = vunpack.c.l.b16 %v262
    %v343 = vunpack.c.l.b16 %v263
    %v344 = vunpack.c.l.b16 %v264
    %v345 = vunpack.c.l.b16 %v265
    %v346 = vunpack.c.l.b16 %v266
    %v347 = vunpack.c.l.b16 %v267
    %v348 = vunpack.c.l.b16 %v268
    %v349 = vunpack.c.l.b16 %v269
    %v350 = vunpack.c.l.b16 %v270
    %v351 = vunpack.c.l.b16 %v271
    %v352 = vunpack.c.l.b16 %v272
    %v353 = vpack.c.b16 %v338, %v337
    %v354 = vpack.c.b16 %v340, %v339
    %v355 = vpack.c.b16 %v342, %v341
    %v356 = vpack.c.b16 %v344, %v343
    %v357 = vpack.c.b16 %v346, %v345
    %v358 = vpack.c.b16 %v348, %v347
    %v359 = vpack.c.b16 %v350, %v349
    %v360 = vpack.c.b16 %v352, %v351
    %vm361 = vcmask 261120
    %362 = vst.msk [vmem:[#allocation3] sm:$0xff] %vm361, %v305
    %363 = vst.msk [vmem:[#allocation3 + $0x10] sm:$0xff] %vm361, %v306
    %364 = vst.msk [vmem:[#allocation3 + $0x20] sm:$0xff] %vm361, %v307
    %365 = vst.msk [vmem:[#allocation3 + $0x30] sm:$0xff] %vm361, %v308
    %366 = vst.msk [vmem:[#allocation3 + $0x40] sm:$0xff] %vm361, %v309
    %367 = vst.msk [vmem:[#allocation3 + $0x50] sm:$0xff] %vm361, %v310
    %368 = vst.msk [vmem:[#allocation3 + $0x60] sm:$0xff] %vm361, %v311
    %369 = vst.msk [vmem:[#allocation3 + $0x70] sm:$0xff] %vm361, %v312
    %vm370 = vsmask.f32 7424
    %v372 = vshrl.u32 %v305, 16
    %v374 = vshll.u32 %v305, 16
    %v376 = vrot.slane %v374, 1
    %v377 = vor.u32 %v372, %v376
    %v379 = vshll.u32 %v353, 16
    %v381 = vrot.slane %v379, 1
    %v382 = vsel %vm370, %v377, %v381
    %v384 = vshrl.u32 %v306, 16
    %v386 = vshll.u32 %v306, 16
    %v388 = vrot.slane %v386, 1
    %v389 = vor.u32 %v384, %v388
    %v391 = vshll.u32 %v354, 16
    %v393 = vrot.slane %v391, 1
    %v394 = vsel %vm370, %v389, %v393
    %v396 = vshrl.u32 %v307, 16
    %v398 = vshll.u32 %v307, 16
    %v400 = vrot.slane %v398, 1
    %v401 = vor.u32 %v396, %v400
    %v403 = vshll.u32 %v355, 16
    %v405 = vrot.slane %v403, 1
    %v406 = vsel %vm370, %v401, %v405
    %v408 = vshrl.u32 %v308, 16
    %v410 = vshll.u32 %v308, 16
    %v412 = vrot.slane %v410, 1
    %v413 = vor.u32 %v408, %v412
    %v415 = vshll.u32 %v356, 16
    %v417 = vrot.slane %v415, 1
    %v418 = vsel %vm370, %v413, %v417
    %v420 = vshrl.u32 %v309, 16
    %v422 = vshll.u32 %v309, 16
    %v424 = vrot.slane %v422, 1
    %v425 = vor.u32 %v420, %v424
    %v427 = vshll.u32 %v357, 16
    %v429 = vrot.slane %v427, 1
    %v430 = vsel %vm370, %v425, %v429
    %v432 = vshrl.u32 %v310, 16
    %v434 = vshll.u32 %v310, 16
    %v436 = vrot.slane %v434, 1
    %v437 = vor.u32 %v432, %v436
    %v439 = vshll.u32 %v358, 16
    %v441 = vrot.slane %v439, 1
    %v442 = vsel %vm370, %v437, %v441
    %v444 = vshrl.u32 %v311, 16
    %v446 = vshll.u32 %v311, 16
    %v448 = vrot.slane %v446, 1
    %v449 = vor.u32 %v444, %v448
    %v451 = vshll.u32 %v359, 16
    %v453 = vrot.slane %v451, 1
    %v454 = vsel %vm370, %v449, %v453
    %v456 = vshrl.u32 %v312, 16
    %v458 = vshll.u32 %v312, 16
    %v460 = vrot.slane %v458, 1
    %v461 = vor.u32 %v456, %v460
    %v463 = vshll.u32 %v360, 16
    %v465 = vrot.slane %v463, 1
    %v466 = vsel %vm370, %v461, %v465
    %467 = vrot.lane.b32.xlu0 %v382, 32
    %v468 = vpop.permute.xlu0 %467
    %469 = vrot.lane.b32.xlu0 %v394, 32
    %v470 = vpop.permute.xlu0 %469
    %471 = vrot.lane.b32.xlu0 %v406, 32
    %v472 = vpop.permute.xlu0 %471
    %473 = vrot.lane.b32.xlu0 %v418, 32
    %v474 = vpop.permute.xlu0 %473
    %475 = vrot.lane.b32.xlu0 %v430, 32
    %v476 = vpop.permute.xlu0 %475
    %477 = vrot.lane.b32.xlu0 %v442, 32
    %v478 = vpop.permute.xlu0 %477
    %479 = vrot.lane.b32.xlu0 %v454, 32
    %v480 = vpop.permute.xlu0 %479
    %481 = vrot.lane.b32.xlu0 %v466, 32
    %v482 = vpop.permute.xlu0 %481
    %vm491 = vcmask 523520
    %492 = vst.msk [vmem:[#allocation3] sm:$0xff] %vm491, %v468
    %493 = vst.msk [vmem:[#allocation3 + $0x10] sm:$0xff] %vm491, %v470
    %494 = vst.msk [vmem:[#allocation3 + $0x20] sm:$0xff] %vm491, %v472
    %495 = vst.msk [vmem:[#allocation3 + $0x30] sm:$0xff] %vm491, %v474
    %496 = vst.msk [vmem:[#allocation3 + $0x40] sm:$0xff] %vm491, %v476
    %497 = vst.msk [vmem:[#allocation3 + $0x50] sm:$0xff] %vm491, %v478
    %498 = vst.msk [vmem:[#allocation3 + $0x60] sm:$0xff] %vm491, %v480
    %499 = vst.msk [vmem:[#allocation3 + $0x70] sm:$0xff] %vm491, %v482
    %vm500 = vcmask 1046528
    %v501 = vrot.slane %v305, 1
    %v502 = vrot.slane %v353, 1
    %v503 = vsel %vm500, %v501, %v502
    %v504 = vrot.slane %v306, 1
    %v505 = vrot.slane %v354, 1
    %v506 = vsel %vm500, %v504, %v505
    %v507 = vrot.slane %v307, 1
    %v508 = vrot.slane %v355, 1
    %v509 = vsel %vm500, %v507, %v508
    %v510 = vrot.slane %v308, 1
    %v511 = vrot.slane %v356, 1
    %v512 = vsel %vm500, %v510, %v511
    %v513 = vrot.slane %v309, 1
    %v514 = vrot.slane %v357, 1
    %v515 = vsel %vm500, %v513, %v514
    %v516 = vrot.slane %v310, 1
    %v517 = vrot.slane %v358, 1
    %v518 = vsel %vm500, %v516, %v517
    %v519 = vrot.slane %v311, 1
    %v520 = vrot.slane %v359, 1
    %v521 = vsel %vm500, %v519, %v520
    %v522 = vrot.slane %v312, 1
    %v523 = vrot.slane %v360, 1
    %v524 = vsel %vm500, %v522, %v523
    %525 = vrot.lane.b32.xlu0 %v503, 64
    %v526 = vpop.permute.xlu0 %525
    %527 = vrot.lane.b32.xlu0 %v506, 64
    %v528 = vpop.permute.xlu0 %527
    %529 = vrot.lane.b32.xlu0 %v509, 64
    %v530 = vpop.permute.xlu0 %529
    %531 = vrot.lane.b32.xlu0 %v512, 64
    %v532 = vpop.permute.xlu0 %531
    %533 = vrot.lane.b32.xlu0 %v515, 64
    %v534 = vpop.permute.xlu0 %533
    %535 = vrot.lane.b32.xlu0 %v518, 64
    %v536 = vpop.permute.xlu0 %535
    %537 = vrot.lane.b32.xlu0 %v521, 64
    %v538 = vpop.permute.xlu0 %537
    %539 = vrot.lane.b32.xlu0 %v524, 64
    %v540 = vpop.permute.xlu0 %539
    %vm549 = vcmask 785920
    %550 = vst.msk [vmem:[#allocation3] sm:$0xff] %vm549, %v526
    %551 = vst.msk [vmem:[#allocation3 + $0x10] sm:$0xff] %vm549, %v528
    %552 = vst.msk [vmem:[#allocation3 + $0x20] sm:$0xff] %vm549, %v530
    %553 = vst.msk [vmem:[#allocation3 + $0x30] sm:$0xff] %vm549, %v532
    %554 = vst.msk [vmem:[#allocation3 + $0x40] sm:$0xff] %vm549, %v534
    %555 = vst.msk [vmem:[#allocation3 + $0x50] sm:$0xff] %vm549, %v536
    %556 = vst.msk [vmem:[#allocation3 + $0x60] sm:$0xff] %vm549, %v538
    %557 = vst.msk [vmem:[#allocation3 + $0x70] sm:$0xff] %vm549, %v540
    %vm558 = vsmask.f32 6400
    %v559 = vrot.slane %v372, 1
    %v560 = vrot.slane %v374, 2
    %v561 = vor.u32 %v559, %v560
    %v562 = vshrl.u32 %v353, 16
    %v564 = vrot.slane %v562, 1
    %v565 = vrot.slane %v379, 2
    %v566 = vor.u32 %v564, %v565
    %v567 = vsel %vm558, %v561, %v566
    %v568 = vrot.slane %v384, 1
    %v569 = vrot.slane %v386, 2
    %v570 = vor.u32 %v568, %v569
    %v571 = vshrl.u32 %v354, 16
    %v573 = vrot.slane %v571, 1
    %v574 = vrot.slane %v391, 2
    %v575 = vor.u32 %v573, %v574
    %v576 = vsel %vm558, %v570, %v575
    %v577 = vrot.slane %v396, 1
    %v578 = vrot.slane %v398, 2
    %v579 = vor.u32 %v577, %v578
    %v580 = vshrl.u32 %v355, 16
    %v582 = vrot.slane %v580, 1
    %v583 = vrot.slane %v403, 2
    %v584 = vor.u32 %v582, %v583
    %v585 = vsel %vm558, %v579, %v584
    %v586 = vrot.slane %v408, 1
    %v587 = vrot.slane %v410, 2
    %v588 = vor.u32 %v586, %v587
    %v589 = vshrl.u32 %v356, 16
    %v591 = vrot.slane %v589, 1
    %v592 = vrot.slane %v415, 2
    %v593 = vor.u32 %v591, %v592
    %v594 = vsel %vm558, %v588, %v593
    %v595 = vrot.slane %v420, 1
    %v596 = vrot.slane %v422, 2
    %v597 = vor.u32 %v595, %v596
    %v598 = vshrl.u32 %v357, 16
    %v600 = vrot.slane %v598, 1
    %v601 = vrot.slane %v427, 2
    %v602 = vor.u32 %v600, %v601
    %v603 = vsel %vm558, %v597, %v602
    %v604 = vrot.slane %v432, 1
    %v605 = vrot.slane %v434, 2
    %v606 = vor.u32 %v604, %v605
    %v607 = vshrl.u32 %v358, 16
    %v609 = vrot.slane %v607, 1
    %v610 = vrot.slane %v439, 2
    %v611 = vor.u32 %v609, %v610
    %v612 = vsel %vm558, %v606, %v611
    %v613 = vrot.slane %v444, 1
    %v614 = vrot.slane %v446, 2
    %v615 = vor.u32 %v613, %v614
    %v616 = vshrl.u32 %v359, 16
    %v618 = vrot.slane %v616, 1
    %v619 = vrot.slane %v451, 2
    %v620 = vor.u32 %v618, %v619
    %v621 = vsel %vm558, %v615, %v620
    %v622 = vrot.slane %v456, 1
    %v623 = vrot.slane %v458, 2
    %v624 = vor.u32 %v622, %v623
    %v625 = vshrl.u32 %v360, 16
    %v627 = vrot.slane %v625, 1
    %v628 = vrot.slane %v463, 2
    %v629 = vor.u32 %v627, %v628
    %v630 = vsel %vm558, %v624, %v629
    %631 = vrot.lane.b32.xlu0 %v567, 96
    %v632 = vpop.permute.xlu0 %631
    %633 = vrot.lane.b32.xlu0 %v576, 96
    %v634 = vpop.permute.xlu0 %633
    %635 = vrot.lane.b32.xlu0 %v585, 96
    %v636 = vpop.permute.xlu0 %635
    %637 = vrot.lane.b32.xlu0 %v594, 96
    %v638 = vpop.permute.xlu0 %637
    %639 = vrot.lane.b32.xlu0 %v603, 96
    %v640 = vpop.permute.xlu0 %639
    %641 = vrot.lane.b32.xlu0 %v612, 96
    %v642 = vpop.permute.xlu0 %641
    %643 = vrot.lane.b32.xlu0 %v621, 96
    %v644 = vpop.permute.xlu0 %643
    %645 = vrot.lane.b32.xlu0 %v630, 96
    %v646 = vpop.permute.xlu0 %645
    %vm655 = vcmask 1048320
    %656 = vst.msk [vmem:[#allocation3] sm:$0xff] %vm655, %v632
    %657 = vst.msk [vmem:[#allocation3 + $0x10] sm:$0xff] %vm655, %v634
    %658 = vst.msk [vmem:[#allocation3 + $0x20] sm:$0xff] %vm655, %v636
    %659 = vst.msk [vmem:[#allocation3 + $0x30] sm:$0xff] %vm655, %v638
    %660 = vst.msk [vmem:[#allocation3 + $0x40] sm:$0xff] %vm655, %v640
    %661 = vst.msk [vmem:[#allocation3 + $0x50] sm:$0xff] %vm655, %v642
    %662 = vst.msk [vmem:[#allocation3 + $0x60] sm:$0xff] %vm655, %v644
    %663 = vst.msk [vmem:[#allocation3 + $0x70] sm:$0xff] %vm655, %v646
    %vm664 = vcmask 1045504
    %v665 = vrot.slane %v305, 2
    %v666 = vrot.slane %v353, 2
    %v667 = vsel %vm664, %v665, %v666
    %v668 = vrot.slane %v306, 2
    %v669 = vrot.slane %v354, 2
    %v670 = vsel %vm664, %v668, %v669
    %v671 = vrot.slane %v307, 2
    %v672 = vrot.slane %v355, 2
    %v673 = vsel %vm664, %v671, %v672
    %v674 = vrot.slane %v308, 2
    %v675 = vrot.slane %v356, 2
    %v676 = vsel %vm664, %v674, %v675
    %v677 = vrot.slane %v309, 2
    %v678 = vrot.slane %v357, 2
    %v679 = vsel %vm664, %v677, %v678
    %v680 = vrot.slane %v310, 2
    %v681 = vrot.slane %v358, 2
    %v682 = vsel %vm664, %v680, %v681
    %v683 = vrot.slane %v311, 2
    %v684 = vrot.slane %v359, 2
    %v685 = vsel %vm664, %v683, %v684
    %v686 = vrot.slane %v312, 2
    %v687 = vrot.slane %v360, 2
    %v688 = vsel %vm664, %v686, %v687
    %697 = vst.msk [vmem:[#allocation3 + $0x8] sm:$0xff] %vm361, %v667
    %698 = vst.msk [vmem:[#allocation3 + $0x18] sm:$0xff] %vm361, %v670
    %699 = vst.msk [vmem:[#allocation3 + $0x28] sm:$0xff] %vm361, %v673
    %700 = vst.msk [vmem:[#allocation3 + $0x38] sm:$0xff] %vm361, %v676
    %701 = vst.msk [vmem:[#allocation3 + $0x48] sm:$0xff] %vm361, %v679
    %702 = vst.msk [vmem:[#allocation3 + $0x58] sm:$0xff] %vm361, %v682
    %703 = vst.msk [vmem:[#allocation3 + $0x68] sm:$0xff] %vm361, %v685
    %704 = vst.msk [vmem:[#allocation3 + $0x78] sm:$0xff] %vm361, %v688
    %vm705 = vsmask.f32 5376
    %v706 = vrot.slane %v372, 2
    %v707 = vrot.slane %v374, 3
    %v708 = vor.u32 %v706, %v707
    %v709 = vrot.slane %v562, 2
    %v710 = vrot.slane %v379, 3
    %v711 = vor.u32 %v709, %v710
    %v712 = vsel %vm705, %v708, %v711
    %v713 = vrot.slane %v384, 2
    %v714 = vrot.slane %v386, 3
    %v715 = vor.u32 %v713, %v714
    %v716 = vrot.slane %v571, 2
    %v717 = vrot.slane %v391, 3
    %v718 = vor.u32 %v716, %v717
    %v719 = vsel %vm705, %v715, %v718
    %v720 = vrot.slane %v396, 2
    %v721 = vrot.slane %v398, 3
    %v722 = vor.u32 %v720, %v721
    %v723 = vrot.slane %v580, 2
    %v724 = vrot.slane %v403, 3
    %v725 = vor.u32 %v723, %v724
    %v726 = vsel %vm705, %v722, %v725
    %v727 = vrot.slane %v408, 2
    %v728 = vrot.slane %v410, 3
    %v729 = vor.u32 %v727, %v728
    %v730 = vrot.slane %v589, 2
    %v731 = vrot.slane %v415, 3
    %v732 = vor.u32 %v730, %v731
    %v733 = vsel %vm705, %v729, %v732
    %v734 = vrot.slane %v420, 2
    %v735 = vrot.slane %v422, 3
    %v736 = vor.u32 %v734, %v735
    %v737 = vrot.slane %v598, 2
    %v738 = vrot.slane %v427, 3
    %v739 = vor.u32 %v737, %v738
    %v740 = vsel %vm705, %v736, %v739
    %v741 = vrot.slane %v432, 2
    %v742 = vrot.slane %v434, 3
    %v743 = vor.u32 %v741, %v742
    %v744 = vrot.slane %v607, 2
    %v745 = vrot.slane %v439, 3
    %v746 = vor.u32 %v744, %v745
    %v747 = vsel %vm705, %v743, %v746
    %v748 = vrot.slane %v444, 2
    %v749 = vrot.slane %v446, 3
    %v750 = vor.u32 %v748, %v749
    %v751 = vrot.slane %v616, 2
    %v752 = vrot.slane %v451, 3
    %v753 = vor.u32 %v751, %v752
    %v754 = vsel %vm705, %v750, %v753
    %v755 = vrot.slane %v456, 2
    %v756 = vrot.slane %v458, 3
    %v757 = vor.u32 %v755, %v756
    %v758 = vrot.slane %v625, 2
    %v759 = vrot.slane %v463, 3
    %v760 = vor.u32 %v758, %v759
    %v761 = vsel %vm705, %v757, %v760
    %762 = vrot.lane.b32.xlu0 %v712, 32
    %v763 = vpop.permute.xlu0 %762
    %764 = vrot.lane.b32.xlu0 %v719, 32
    %v765 = vpop.permute.xlu0 %764
    %766 = vrot.lane.b32.xlu0 %v726, 32
    %v767 = vpop.permute.xlu0 %766
    %768 = vrot.lane.b32.xlu0 %v733, 32
    %v769 = vpop.permute.xlu0 %768
    %770 = vrot.lane.b32.xlu0 %v740, 32
    %v771 = vpop.permute.xlu0 %770
    %772 = vrot.lane.b32.xlu0 %v747, 32
    %v773 = vpop.permute.xlu0 %772
    %774 = vrot.lane.b32.xlu0 %v754, 32
    %v775 = vpop.permute.xlu0 %774
    %776 = vrot.lane.b32.xlu0 %v761, 32
    %v777 = vpop.permute.xlu0 %776
    %786 = vst.msk [vmem:[#allocation3 + $0x8] sm:$0xff] %vm491, %v763
    %787 = vst.msk [vmem:[#allocation3 + $0x18] sm:$0xff] %vm491, %v765
    %788 = vst.msk [vmem:[#allocation3 + $0x28] sm:$0xff] %vm491, %v767
    %789 = vst.msk [vmem:[#allocation3 + $0x38] sm:$0xff] %vm491, %v769
    %790 = vst.msk [vmem:[#allocation3 + $0x48] sm:$0xff] %vm491, %v771
    %791 = vst.msk [vmem:[#allocation3 + $0x58] sm:$0xff] %vm491, %v773
    %792 = vst.msk [vmem:[#allocation3 + $0x68] sm:$0xff] %vm491, %v775
    %793 = vst.msk [vmem:[#allocation3 + $0x78] sm:$0xff] %vm491, %v777
    %v794 = vld [vmem:[#allocation3] sm:$0xff]
    %v795 = vld [vmem:[#allocation3 + $0x8] sm:$0xff]
    %v796 = vld [vmem:[#allocation3 + $0x10] sm:$0xff]
    %v797 = vld [vmem:[#allocation3 + $0x18] sm:$0xff]
    %v798 = vld [vmem:[#allocation3 + $0x20] sm:$0xff]
    %v799 = vld [vmem:[#allocation3 + $0x28] sm:$0xff]
    %v800 = vld [vmem:[#allocation3 + $0x30] sm:$0xff]
    %v801 = vld [vmem:[#allocation3 + $0x38] sm:$0xff]
    %v802 = vld [vmem:[#allocation3 + $0x40] sm:$0xff]
    %v803 = vld [vmem:[#allocation3 + $0x48] sm:$0xff]
    %v804 = vld [vmem:[#allocation3 + $0x50] sm:$0xff]
    %v805 = vld [vmem:[#allocation3 + $0x58] sm:$0xff]
    %v806 = vld [vmem:[#allocation3 + $0x60] sm:$0xff]
    %v807 = vld [vmem:[#allocation3 + $0x68] sm:$0xff]
    %v808 = vld [vmem:[#allocation3 + $0x70] sm:$0xff]
    %v809 = vld [vmem:[#allocation3 + $0x78] sm:$0xff]
    %v810 = vld [vmem:[%s3] sm:$0xff]
    %v811 = vld [vmem:[%s3 + $0x8] sm:$0xff]
    %v812 = vld [vmem:[%s3 + $0x10] sm:$0xff]
    %v813 = vld [vmem:[%s3 + $0x18] sm:$0xff]
    %v814 = vld [vmem:[%s3 + $0x20] sm:$0xff]
    %v815 = vld [vmem:[%s3 + $0x28] sm:$0xff]
    %v816 = vld [vmem:[%s3 + $0x30] sm:$0xff]
    %v817 = vld [vmem:[%s3 + $0x38] sm:$0xff]
    %v818 = vld [vmem:[%s3 + $0x40] sm:$0xff]
    %v819 = vld [vmem:[%s3 + $0x48] sm:$0xff]
    %v820 = vld [vmem:[%s3 + $0x50] sm:$0xff]
    %v821 = vld [vmem:[%s3 + $0x58] sm:$0xff]
    %v822 = vld [vmem:[%s3 + $0x60] sm:$0xff]
    %v823 = vld [vmem:[%s3 + $0x68] sm:$0xff]
    %v824 = vld [vmem:[%s3 + $0x70] sm:$0xff]
    %v825 = vld [vmem:[%s3 + $0x78] sm:$0xff]
    %v826 = vld [vmem:[%s3 + $0x80] sm:$0xff]
    %v827 = vld [vmem:[%s3 + $0x88] sm:$0xff]
    %v828 = vld [vmem:[%s3 + $0x90] sm:$0xff]
    %v829 = vld [vmem:[%s3 + $0x98] sm:$0xff]
    %v830 = vld [vmem:[%s3 + $0xa0] sm:$0xff]
    %v831 = vld [vmem:[%s3 + $0xa8] sm:$0xff]
    %v832 = vld [vmem:[%s3 + $0xb0] sm:$0xff]
    %v833 = vld [vmem:[%s3 + $0xb8] sm:$0xff]
    %v858 = vunpack.c.l.b16 %v810
    %v859 = vunpack.c.h.b16 %v810
    %v860 = vunpack.c.l.b16 %v811
    %v861 = vunpack.c.h.b16 %v811
    %v862 = vunpack.c.l.b16 %v812
    %v863 = vunpack.c.h.b16 %v812
    %v864 = vunpack.c.l.b16 %v813
    %v865 = vunpack.c.h.b16 %v813
    %v866 = vunpack.c.l.b16 %v814
    %v867 = vunpack.c.h.b16 %v814
    %v868 = vunpack.c.l.b16 %v815
    %v869 = vunpack.c.h.b16 %v815
    %v870 = vunpack.c.l.b16 %v816
    %v871 = vunpack.c.h.b16 %v816
    %v872 = vunpack.c.l.b16 %v817
    %v873 = vunpack.c.h.b16 %v817
    %v874 = vunpack.c.l.b16 %v818
    %v875 = vunpack.c.h.b16 %v818
    %v876 = vunpack.c.l.b16 %v819
    %v877 = vunpack.c.h.b16 %v819
    %v878 = vunpack.c.l.b16 %v820
    %v879 = vunpack.c.h.b16 %v820
    %v880 = vunpack.c.l.b16 %v821
    %v881 = vunpack.c.h.b16 %v821
    %v882 = vunpack.c.l.b16 %v822
    %v883 = vunpack.c.h.b16 %v822
    %v884 = vunpack.c.l.b16 %v823
    %v885 = vunpack.c.h.b16 %v823
    %v886 = vunpack.c.l.b16 %v824
    %v887 = vunpack.c.h.b16 %v824
    %v888 = vunpack.c.l.b16 %v825
    %v889 = vunpack.c.h.b16 %v825
    %v890 = vunpack.c.l.b16 %v826
    %v891 = vunpack.c.h.b16 %v826
    %v892 = vunpack.c.l.b16 %v827
    %v893 = vunpack.c.h.b16 %v827
    %v894 = vunpack.c.l.b16 %v828
    %v895 = vunpack.c.h.b16 %v828
    %v896 = vunpack.c.l.b16 %v829
    %v897 = vunpack.c.h.b16 %v829
    %v898 = vunpack.c.l.b16 %v830
    %v899 = vunpack.c.h.b16 %v830
    %v900 = vunpack.c.l.b16 %v831
    %v901 = vunpack.c.h.b16 %v831
    %v902 = vunpack.c.l.b16 %v832
    %v903 = vunpack.c.h.b16 %v832
    %v904 = vunpack.c.l.b16 %v833
    %v905 = vunpack.c.h.b16 %v833
    %v906 = vpack.c.b16 %v860, %v858
    %v907 = vpack.c.b16 %v861, %v859
    %v908 = vpack.c.b16 %v864, %v862
    %v909 = vpack.c.b16 %v865, %v863
    %v910 = vpack.c.b16 %v868, %v866
    %v911 = vpack.c.b16 %v869, %v867
    %v912 = vpack.c.b16 %v872, %v870
    %v913 = vpack.c.b16 %v873, %v871
    %v914 = vpack.c.b16 %v876, %v874
    %v915 = vpack.c.b16 %v877, %v875
    %v916 = vpack.c.b16 %v880, %v878
    %v917 = vpack.c.b16 %v881, %v879
    %v918 = vpack.c.b16 %v884, %v882
    %v919 = vpack.c.b16 %v885, %v883
    %v920 = vpack.c.b16 %v888, %v886
    %v921 = vpack.c.b16 %v889, %v887
    %v922 = vpack.c.b16 %v892, %v890
    %v923 = vpack.c.b16 %v893, %v891
    %v924 = vpack.c.b16 %v896, %v894
    %v925 = vpack.c.b16 %v897, %v895
    %v926 = vpack.c.b16 %v900, %v898
    %v927 = vpack.c.b16 %v901, %v899
    %v928 = vpack.c.b16 %v904, %v902
    %v929 = vpack.c.b16 %v905, %v903
    %vm954 = vcmask 523264
    %v956 = vsel %vm954, %v795, 0
    %v959 = vsel %vm954, %v797, 0
    %v962 = vsel %vm954, %v799, 0
    %v965 = vsel %vm954, %v801, 0
    %v968 = vsel %vm954, %v803, 0
    %v971 = vsel %vm954, %v805, 0
    %v974 = vsel %vm954, %v807, 0
    %v977 = vsel %vm954, %v809, 0
    %979 = vmatprep.subr.bf16.mxu0 %v907
    %980 = vmatpush1.bf16.msra.mxu0 %v906
    %981 = vmatprep.subr.bf16.mxu0 %v909
    %982 = vmatpush1.bf16.msra.mxu0 %v908
    %983 = vmatprep.subr.bf16.mxu0 %v911
    %984 = vmatpush1.bf16.msra.mxu0 %v910
    %985 = vmatprep.subr.bf16.mxu0 %v913
    %986 = vmatpush1.bf16.msra.mxu0 %v912
    %987 = vmatprep.subr.bf16.mxu0 %v915
    %988 = vmatpush1.bf16.msra.mxu0 %v914
    %989 = vmatprep.subr.bf16.mxu0 %v917
    %990 = vmatpush1.bf16.msra.mxu0 %v916
    %991 = vmatprep.subr.bf16.mxu0 %v919
    %992 = vmatpush1.bf16.msra.mxu0 %v918
    %993 = vmatprep.subr.bf16.mxu0 %v921
    %994 = vmatpush1.bf16.msra.mxu0 %v920
    %995 = vmatprep.subr.bf16.mxu0 %v923
    %996 = vmatpush1.bf16.msra.mxu0 %v922
    %997 = vmatprep.subr.bf16.mxu0 %v925
    %998 = vmatpush1.bf16.msra.mxu0 %v924
    %999 = vmatprep.subr.bf16.mxu0 %v927
    %1000 = vmatpush1.bf16.msra.mxu0 %v926
    %1001 = vmatprep.subr.bf16.mxu0 %v929
    %1002 = vmatpush1.bf16.msra.mxu0 %v928
    %1003 = vmatprep.subr.bf16.mxu0 0
    %1004 = vmatpush1.bf16.msra.mxu0 0
    %1005 = vmatprep.subr.bf16.mxu0 0
    %1006 = vmatpush1.bf16.msra.mxu0 0
    %1007 = vmatprep.subr.bf16.mxu0 0
    %1008 = vmatpush1.bf16.msra.mxu0 0
    %1009 = vmatprep.subr.bf16.mxu0 0
    %1010 = vmatpush1.bf16.msra.mxu0 0
    %1011 = vmatprep.mubr.bf16.mxu0 %v956
    %1012 = vmatmul.mubr.bf16.gmra.mrb[0].mxu0 %v794
    %v1013 = vpop.f32.mrb[0].mxu0
    %v1014 = vadd.f32 0.0, %v1013
    %v1015 = vpop.f32.mrb[0].mxu0
    %v1016 = vadd.f32 0.0, %v1015
    %v1017 = vpop.f32.mrb[0].mxu0
    %v1018 = vadd.f32 0.0, %v1017
    %v1019 = vpop.f32.mrb[0].mxu0
    %v1020 = vadd.f32 0.0, %v1019
    %1021 = vmatprep.mubr.bf16.mxu0 %v959
    %1022 = vmatmul.mubr.bf16.gmra.mrb[0].mxu0 %v796
    %v1023 = vpop.f32.mrb[0].mxu0
    %v1024 = vadd.f32 0.0, %v1023
    %v1025 = vpop.f32.mrb[0].mxu0
    %v1026 = vadd.f32 0.0, %v1025
    %v1027 = vpop.f32.mrb[0].mxu0
    %v1028 = vadd.f32 0.0, %v1027
    %v1029 = vpop.f32.mrb[0].mxu0
    %v1030 = vadd.f32 0.0, %v1029
    %1031 = vmatprep.mubr.bf16.mxu0 %v962
    %1032 = vmatmul.mubr.bf16.gmra.mrb[0].mxu0 %v798
    %v1033 = vpop.f32.mrb[0].mxu0
    %v1034 = vadd.f32 0.0, %v1033
    %v1035 = vpop.f32.mrb[0].mxu0
    %v1036 = vadd.f32 0.0, %v1035
    %v1037 = vpop.f32.mrb[0].mxu0
    %v1038 = vadd.f32 0.0, %v1037
    %v1039 = vpop.f32.mrb[0].mxu0
    %v1040 = vadd.f32 0.0, %v1039
    %1041 = vmatprep.mubr.bf16.mxu0 %v965
    %1042 = vmatmul.mubr.bf16.gmra.mrb[0].mxu0 %v800
    %v1043 = vpop.f32.mrb[0].mxu0
    %v1044 = vadd.f32 0.0, %v1043
    %v1045 = vpop.f32.mrb[0].mxu0
    %v1046 = vadd.f32 0.0, %v1045
    %v1047 = vpop.f32.mrb[0].mxu0
    %v1048 = vadd.f32 0.0, %v1047
    %v1049 = vpop.f32.mrb[0].mxu0
    %v1050 = vadd.f32 0.0, %v1049
    %1051 = vmatprep.mubr.bf16.mxu0 %v968
    %1052 = vmatmul.mubr.bf16.gmra.mrb[0].mxu0 %v802
    %v1053 = vpop.f32.mrb[0].mxu0
    %v1054 = vadd.f32 0.0, %v1053
    %v1055 = vpop.f32.mrb[0].mxu0
    %v1056 = vadd.f32 0.0, %v1055
    %v1057 = vpop.f32.mrb[0].mxu0
    %v1058 = vadd.f32 0.0, %v1057
    %v1059 = vpop.f32.mrb[0].mxu0
    %v1060 = vadd.f32 0.0, %v1059
    %1061 = vmatprep.mubr.bf16.mxu0 %v971
    %1062 = vmatmul.mubr.bf16.gmra.mrb[0].mxu0 %v804
    %v1063 = vpop.f32.mrb[0].mxu0
    %v1064 = vadd.f32 0.0, %v1063
    %v1065 = vpop.f32.mrb[0].mxu0
    %v1066 = vadd.f32 0.0, %v1065
    %v1067 = vpop.f32.mrb[0].mxu0
    %v1068 = vadd.f32 0.0, %v1067
    %v1069 = vpop.f32.mrb[0].mxu0
    %v1070 = vadd.f32 0.0, %v1069
    %1071 = vmatprep.mubr.bf16.mxu0 %v974
    %1072 = vmatmul.mubr.bf16.gmra.mrb[0].mxu0 %v806
    %v1073 = vpop.f32.mrb[0].mxu0
    %v1074 = vadd.f32 0.0, %v1073
    %v1075 = vpop.f32.mrb[0].mxu0
    %v1076 = vadd.f32 0.0, %v1075
    %v1077 = vpop.f32.mrb[0].mxu0
    %v1078 = vadd.f32 0.0, %v1077
    %v1079 = vpop.f32.mrb[0].mxu0
    %v1080 = vadd.f32 0.0, %v1079
    %1081 = vmatprep.mubr.bf16.mxu0 %v977
    %1082 = vmatmul.mubr.bf16.gmra.mrb[0].mxu0 %v808
    %v1083 = vpop.f32.mrb[0].mxu0
    %v1084 = vadd.f32 0.0, %v1083
    %v1085 = vpop.f32.mrb[0].mxu0
    %v1086 = vadd.f32 0.0, %v1085
    %v1087 = vpop.f32.mrb[0].mxu0
    %v1088 = vadd.f32 0.0, %v1087
    %v1089 = vpop.f32.mrb[0].mxu0
    %v1090 = vadd.f32 0.0, %v1089
    %1091 = vdwg.mxu0
    %v1092 = vld [vmem:[#allocation2] sm:$0xff]
    %v1093 = vld [vmem:[#allocation2 + $0x8] sm:$0xff]
    %v1094 = vld [vmem:[%s2] sm:$0xff]
    %v1095 = vld [vmem:[%s2 + $0x8] sm:$0xff]
    %v1096 = vld [vmem:[%s2 + $0x10] sm:$0xff]
    %v1097 = vld [vmem:[%s2 + $0x18] sm:$0xff]
    %v1098 = vadd.f32 %v1014, %v1094
    %v1099 = vadd.f32 %v1016, %v1095
    %v1100 = vadd.f32 %v1018, %v1096
    %v1101 = vadd.f32 %v1020, %v1097
    %v1102 = vadd.f32 %v1024, %v1094
    %v1103 = vadd.f32 %v1026, %v1095
    %v1104 = vadd.f32 %v1028, %v1096
    %v1105 = vadd.f32 %v1030, %v1097
    %v1106 = vadd.f32 %v1034, %v1094
    %v1107 = vadd.f32 %v1036, %v1095
    %v1108 = vadd.f32 %v1038, %v1096
    %v1109 = vadd.f32 %v1040, %v1097
    %v1110 = vadd.f32 %v1044, %v1094
    %v1111 = vadd.f32 %v1046, %v1095
    %v1112 = vadd.f32 %v1048, %v1096
    %v1113 = vadd.f32 %v1050, %v1097
    %v1114 = vadd.f32 %v1054, %v1094
    %v1115 = vadd.f32 %v1056, %v1095
    %v1116 = vadd.f32 %v1058, %v1096
    %v1117 = vadd.f32 %v1060, %v1097
    %v1118 = vadd.f32 %v1064, %v1094
    %v1119 = vadd.f32 %v1066, %v1095
    %v1120 = vadd.f32 %v1068, %v1096
    %v1121 = vadd.f32 %v1070, %v1097
    %v1122 = vadd.f32 %v1074, %v1094
    %v1123 = vadd.f32 %v1076, %v1095
    %v1124 = vadd.f32 %v1078, %v1096
    %v1125 = vadd.f32 %v1080, %v1097
    %v1126 = vadd.f32 %v1084, %v1094
    %v1127 = vadd.f32 %v1086, %v1095
    %v1128 = vadd.f32 %v1088, %v1096
    %v1129 = vadd.f32 %v1090, %v1097
    %v1130 = vmax.f32 %v1098, %v1100
    %v1131 = vrot.slane %v1130, 4
    %v1132 = vmax.f32 %v1130, %v1131
    %v1133 = vrot.slane %v1132, 2
    %v1134 = vmax.f32 %v1132, %v1133
    %v1135 = vrot.slane %v1134, 1
    %v1136 = vmax.f32 %v1134, %v1135
    %v1137 = vmax.f32 %v1099, %v1101
    %v1138 = vrot.slane %v1137, 4
    %v1139 = vmax.f32 %v1137, %v1138
    %v1140 = vrot.slane %v1139, 2
    %v1141 = vmax.f32 %v1139, %v1140
    %v1142 = vrot.slane %v1141, 1
    %v1143 = vmax.f32 %v1141, %v1142
    %v1144 = vmax.f32 %v1102, %v1104
    %v1145 = vrot.slane %v1144, 4
    %v1146 = vmax.f32 %v1144, %v1145
    %v1147 = vrot.slane %v1146, 2
    %v1148 = vmax.f32 %v1146, %v1147
    %v1149 = vrot.slane %v1148, 1
    %v1150 = vmax.f32 %v1148, %v1149
    %v1151 = vmax.f32 %v1103, %v1105
    %v1152 = vrot.slane %v1151, 4
    %v1153 = vmax.f32 %v1151, %v1152
    %v1154 = vrot.slane %v1153, 2
    %v1155 = vmax.f32 %v1153, %v1154
    %v1156 = vrot.slane %v1155, 1
    %v1157 = vmax.f32 %v1155, %v1156
    %v1158 = vmax.f32 %v1106, %v1108
    %v1159 = vrot.slane %v1158, 4
    %v1160 = vmax.f32 %v1158, %v1159
    %v1161 = vrot.slane %v1160, 2
    %v1162 = vmax.f32 %v1160, %v1161
    %v1163 = vrot.slane %v1162, 1
    %v1164 = vmax.f32 %v1162, %v1163
    %v1165 = vmax.f32 %v1107, %v1109
    %v1166 = vrot.slane %v1165, 4
    %v1167 = vmax.f32 %v1165, %v1166
    %v1168 = vrot.slane %v1167, 2
    %v1169 = vmax.f32 %v1167, %v1168
    %v1170 = vrot.slane %v1169, 1
    %v1171 = vmax.f32 %v1169, %v1170
    %v1172 = vmax.f32 %v1110, %v1112
    %v1173 = vrot.slane %v1172, 4
    %v1174 = vmax.f32 %v1172, %v1173
    %v1175 = vrot.slane %v1174, 2
    %v1176 = vmax.f32 %v1174, %v1175
    %v1177 = vrot.slane %v1176, 1
    %v1178 = vmax.f32 %v1176, %v1177
    %v1179 = vmax.f32 %v1111, %v1113
    %v1180 = vrot.slane %v1179, 4
    %v1181 = vmax.f32 %v1179, %v1180
    %v1182 = vrot.slane %v1181, 2
    %v1183 = vmax.f32 %v1181, %v1182
    %v1184 = vrot.slane %v1183, 1
    %v1185 = vmax.f32 %v1183, %v1184
    %v1186 = vmax.f32 %v1114, %v1116
    %v1187 = vrot.slane %v1186, 4
    %v1188 = vmax.f32 %v1186, %v1187
    %v1189 = vrot.slane %v1188, 2
    %v1190 = vmax.f32 %v1188, %v1189
    %v1191 = vrot.slane %v1190, 1
    %v1192 = vmax.f32 %v1190, %v1191
    %v1193 = vmax.f32 %v1115, %v1117
    %v1194 = vrot.slane %v1193, 4
    %v1195 = vmax.f32 %v1193, %v1194
    %v1196 = vrot.slane %v1195, 2
    %v1197 = vmax.f32 %v1195, %v1196
    %v1198 = vrot.slane %v1197, 1
    %v1199 = vmax.f32 %v1197, %v1198
    %v1200 = vmax.f32 %v1118, %v1120
    %v1201 = vrot.slane %v1200, 4
    %v1202 = vmax.f32 %v1200, %v1201
    %v1203 = vrot.slane %v1202, 2
    %v1204 = vmax.f32 %v1202, %v1203
    %v1205 = vrot.slane %v1204, 1
    %v1206 = vmax.f32 %v1204, %v1205
    %v1207 = vmax.f32 %v1119, %v1121
    %v1208 = vrot.slane %v1207, 4
    %v1209 = vmax.f32 %v1207, %v1208
    %v1210 = vrot.slane %v1209, 2
    %v1211 = vmax.f32 %v1209, %v1210
    %v1212 = vrot.slane %v1211, 1
    %v1213 = vmax.f32 %v1211, %v1212
    %v1214 = vmax.f32 %v1122, %v1124
    %v1215 = vrot.slane %v1214, 4
    %v1216 = vmax.f32 %v1214, %v1215
    %v1217 = vrot.slane %v1216, 2
    %v1218 = vmax.f32 %v1216, %v1217
    %v1219 = vrot.slane %v1218, 1
    %v1220 = vmax.f32 %v1218, %v1219
    %v1221 = vmax.f32 %v1123, %v1125
    %v1222 = vrot.slane %v1221, 4
    %v1223 = vmax.f32 %v1221, %v1222
    %v1224 = vrot.slane %v1223, 2
    %v1225 = vmax.f32 %v1223, %v1224
    %v1226 = vrot.slane %v1225, 1
    %v1227 = vmax.f32 %v1225, %v1226
    %v1228 = vmax.f32 %v1126, %v1128
    %v1229 = vrot.slane %v1228, 4
    %v1230 = vmax.f32 %v1228, %v1229
    %v1231 = vrot.slane %v1230, 2
    %v1232 = vmax.f32 %v1230, %v1231
    %v1233 = vrot.slane %v1232, 1
    %v1234 = vmax.f32 %v1232, %v1233
    %v1235 = vmax.f32 %v1127, %v1129
    %v1236 = vrot.slane %v1235, 4
    %v1237 = vmax.f32 %v1235, %v1236
    %v1238 = vrot.slane %v1237, 2
    %v1239 = vmax.f32 %v1237, %v1238
    %v1240 = vrot.slane %v1239, 1
    %v1241 = vmax.f32 %v1239, %v1240
    %vm1258 = vcmask 1041409
    %v1259 = vsel %vm1258, %v1150, %v1136
    %vm1260 = vcmask 1042434
    %v1261 = vsel %vm1260, %v1164, %v1259
    %vm1262 = vcmask 1043459
    %v1263 = vsel %vm1262, %v1178, %v1261
    %vm1264 = vcmask 1044484
    %v1265 = vsel %vm1264, %v1192, %v1263
    %vm1266 = vcmask 1045509
    %v1267 = vsel %vm1266, %v1206, %v1265
    %vm1268 = vcmask 1046534
    %v1269 = vsel %vm1268, %v1220, %v1267
    %vm1270 = vcmask 1047559
    %v1271 = vsel %vm1270, %v1234, %v1269
    %v1272 = vsel %vm1258, %v1157, %v1143
    %v1273 = vsel %vm1260, %v1171, %v1272
    %v1274 = vsel %vm1262, %v1185, %v1273
    %v1275 = vsel %vm1264, %v1199, %v1274
    %v1276 = vsel %vm1266, %v1213, %v1275
    %v1277 = vsel %vm1268, %v1227, %v1276
    %v1278 = vsel %vm1270, %v1241, %v1277
    %v1281 = vmax.f32 %v1092, %v1271
    %v1282 = vmax.f32 %v1093, %v1278
    %1283 = vst [vmem:[#allocation2] sm:$0xff] %v1281
    %1284 = vst [vmem:[#allocation2 + $0x8] sm:$0xff] %v1282
    // Predicated region
    $region116: #{fake_news_detector_forward.1} parent=1 // pred_check
      %p1285 = pneg %p235
    $region117: #{fake_news_detector_forward.1} parent=1 // pred_check_branch
      %1287 = sbr.rel (%p1285) target = $region119
    $region118: #{fake_news_detector_forward.1} parent=1 // pred_region
      %v1288 = vld [vmem:[#allocation2] sm:$0xff]
      %v1289 = vld [vmem:[#allocation2 + $0x8] sm:$0xff]
      %v1290 = vld [vmem:[%s4] sm:$0x3]
      %v1292 = vlaneseq
      %v1293 = vshrl.u32 %v1292, 7
      %v1294 = vsub.s32 0, %v1293
      %v1295 = vrot.slane %v1290, %v1294
      %v1296 = vlaneseq
      %v1297 = vshrl.u32 %v1296, 7
      %v1298 = vsub.s32 1, %v1297
      %v1299 = vrot.slane %v1290, %v1298
      %v1302 = vadd.f32 %v1288, %v1295
      %v1303 = vadd.f32 %v1289, %v1299
      %v1304 = vmax.f32 %v1302, 0.0
      %v1305 = vmax.f32 %v1303, 0.0
      %v1306 = vld [vmem:[%s5] sm:$0xff]
      %v1307 = vld [vmem:[%s5 + $0x8] sm:$0xff]
      %v1308 = vld [vmem:[%s5 + $0x10] sm:$0xff]
      %v1309 = vld [vmem:[%s5 + $0x18] sm:$0xff]
      %v1310 = vld [vmem:[%s5 + $0x20] sm:$0xff]
      %v1311 = vld [vmem:[%s5 + $0x28] sm:$0xff]
      %v1312 = vld [vmem:[%s5 + $0x30] sm:$0xff]
      %v1313 = vld [vmem:[%s5 + $0x38] sm:$0xff]
      %v1314 = vld [vmem:[%s5 + $0x40] sm:$0xff]
      %v1315 = vld [vmem:[%s5 + $0x48] sm:$0xff]
      %v1316 = vld [vmem:[%s5 + $0x50] sm:$0xff]
      %v1317 = vld [vmem:[%s5 + $0x58] sm:$0xff]
      %v1318 = vld [vmem:[%s5 + $0x60] sm:$0xff]
      %v1319 = vld [vmem:[%s5 + $0x68] sm:$0xff]
      %v1320 = vld [vmem:[%s5 + $0x70] sm:$0xff]
      %v1321 = vld [vmem:[%s5 + $0x78] sm:$0xff]
      %v1322 = vld [vmem:[%s5 + $0x80] sm:$0xff]
      %v1323 = vld [vmem:[%s5 + $0x88] sm:$0xff]
      %v1324 = vld [vmem:[%s5 + $0x90] sm:$0xff]
      %v1325 = vld [vmem:[%s5 + $0x98] sm:$0xff]
      %v1326 = vld [vmem:[%s5 + $0xa0] sm:$0xff]
      %v1327 = vld [vmem:[%s5 + $0xa8] sm:$0xff]
      %v1328 = vld [vmem:[%s5 + $0xb0] sm:$0xff]
      %v1329 = vld [vmem:[%s5 + $0xb8] sm:$0xff]
      %v1330 = vld [vmem:[%s5 + $0xc0] sm:$0xff]
      %v1331 = vld [vmem:[%s5 + $0xc8] sm:$0xff]
      %v1332 = vld [vmem:[%s5 + $0xd0] sm:$0xff]
      %v1333 = vld [vmem:[%s5 + $0xd8] sm:$0xff]
      %v1334 = vld [vmem:[%s5 + $0xe0] sm:$0xff]
      %v1335 = vld [vmem:[%s5 + $0xe8] sm:$0xff]
      %v1336 = vld [vmem:[%s5 + $0xf0] sm:$0xff]
      %v1337 = vld [vmem:[%s5 + $0xf8] sm:$0xff]
      %v1338 = vld [vmem:[%s6] sm:$0x1]
      %v1340 = vlaneseq
      %v1341 = vshrl.u32 %v1340, 7
      %v1342 = vsub.s32 0, %v1341
      %v1343 = vrot.slane %v1338, %v1342
      %1345 = vmatprep.subr.mxu0 0.0
      %1346 = vmatpush1.msra.mxu0 %v1306
      %1347 = vmatprep.subr.mxu0 0.0
      %1348 = vmatpush1.msra.mxu0 %v1307
      %1349 = vmatprep.subr.mxu0 0.0
      %1350 = vmatpush1.msra.mxu0 %v1308
      %1351 = vmatprep.subr.mxu0 0.0
      %1352 = vmatpush1.msra.mxu0 %v1309
      %1353 = vmatprep.subr.mxu0 0.0
      %1354 = vmatpush1.msra.mxu0 %v1310
      %1355 = vmatprep.subr.mxu0 0.0
      %1356 = vmatpush1.msra.mxu0 %v1311
      %1357 = vmatprep.subr.mxu0 0.0
      %1358 = vmatpush1.msra.mxu0 %v1312
      %1359 = vmatprep.subr.mxu0 0.0
      %1360 = vmatpush1.msra.mxu0 %v1313
      %1361 = vmatprep.subr.mxu0 0.0
      %1362 = vmatpush1.msra.mxu0 %v1314
      %1363 = vmatprep.subr.mxu0 0.0
      %1364 = vmatpush1.msra.mxu0 %v1315
      %1365 = vmatprep.subr.mxu0 0.0
      %1366 = vmatpush1.msra.mxu0 %v1316
      %1367 = vmatprep.subr.mxu0 0.0
      %1368 = vmatpush1.msra.mxu0 %v1317
      %1369 = vmatprep.subr.mxu0 0.0
      %1370 = vmatpush1.msra.mxu0 %v1318
      %1371 = vmatprep.subr.mxu0 0.0
      %1372 = vmatpush1.msra.mxu0 %v1319
      %1373 = vmatprep.subr.mxu0 0.0
      %1374 = vmatpush1.msra.mxu0 %v1320
      %1375 = vmatprep.subr.mxu0 0.0
      %1376 = vmatpush1.msra.mxu0 %v1321
      %1377 = vmatprep.subr.mxu0 0.0
      %1378 = vmatpush1.msra.mxu0 %v1322
      %1379 = vmatprep.subr.mxu0 0.0
      %1380 = vmatpush1.msra.mxu0 %v1323
      %1381 = vmatprep.subr.mxu0 0.0
      %1382 = vmatpush1.msra.mxu0 %v1324
      %1383 = vmatprep.subr.mxu0 0.0
      %1384 = vmatpush1.msra.mxu0 %v1325
      %1385 = vmatprep.subr.mxu0 0.0
      %1386 = vmatpush1.msra.mxu0 %v1326
      %1387 = vmatprep.subr.mxu0 0.0
      %1388 = vmatpush1.msra.mxu0 %v1327
      %1389 = vmatprep.subr.mxu0 0.0
      %1390 = vmatpush1.msra.mxu0 %v1328
      %1391 = vmatprep.subr.mxu0 0.0
      %1392 = vmatpush1.msra.mxu0 %v1329
      %1393 = vmatprep.subr.mxu0 0.0
      %1394 = vmatpush1.msra.mxu0 %v1330
      %1395 = vmatprep.subr.mxu0 0.0
      %1396 = vmatpush1.msra.mxu0 %v1331
      %1397 = vmatprep.subr.mxu0 0.0
      %1398 = vmatpush1.msra.mxu0 %v1332
      %1399 = vmatprep.subr.mxu0 0.0
      %1400 = vmatpush1.msra.mxu0 %v1333
      %1401 = vmatprep.subr.mxu0 0.0
      %1402 = vmatpush1.msra.mxu0 %v1334
      %1403 = vmatprep.subr.mxu0 0.0
      %1404 = vmatpush1.msra.mxu0 %v1335
      %1405 = vmatprep.subr.mxu0 0.0
      %1406 = vmatpush1.msra.mxu0 %v1336
      %1407 = vmatprep.subr.mxu0 0.0
      %1408 = vmatpush1.msra.mxu0 %v1337
      %1409 = vmatprep.mubr.f32.mxu0 %v1305
      %1410 = vmatmul.mubr.f32.gmra.mrb[0].mxu0 %v1304
      %v1411 = vpop.f32.mrb[0].mxu0
      %v1412 = vadd.f32 %v1343, %v1411
      %v1413 = vpop.f32.mrb[0].mxu0
      %1414 = vdwg.mxu0
      %v1415 = vxor.u32 %v1412, 2147483648
      %v1416 = vmul.f32 %v1415, 1.442695
      %v1417 = vpow.pop %v1416
      %v1418 = vadd.f32 %v1417, 1.0
      %v1419 = vrcp.pop %v1418
      %v1420 = vmul.f32 1.0, %v1419
      %1421 = vst [vmem:[%s7] sm:$0xff] %v1420
    $region119: #{fake_news_detector_forward.1} parent=1 // pred_fallthru
      _
    // Predicated region
    $region120: #{fake_news_detector_forward.1} parent=1 // pred_check
      _
    $region121: #{fake_news_detector_forward.1} parent=1 // pred_check_branch
      %1423 = sbr.rel (0) target = $region123
    $region122: #{fake_news_detector_forward.1} parent=1 // pred_region
      _
    $region123: #{fake_news_detector_forward.1} parent=1 // pred_fallthru
      _
    // Predicated region
    $region124: #{fake_news_detector_forward.1} parent=1 // pred_check
      _
    $region125: #{fake_news_detector_forward.1} parent=1 // pred_check_branch
      %1425 = sbr.rel (0) target = $region127
    $region126: #{fake_news_detector_forward.1} parent=1 // pred_region
      _
    $region127: #{fake_news_detector_forward.1} parent=1 // pred_fallthru
      _

</llo_original>
